<compile_context>
chip_gen: v5e
topology: v5e:2x2
jax: 0.10.0
libtpu: 0.0.40
codegen_flags: <defaults>
</compile_context>

<pallas_src>
import functools

import jax
import jax.numpy as jnp
import numpy as np
from jax.experimental import pallas as pl
from jax.experimental.pallas import tpu as pltpu


def gru_decoder_kernel(x_ref, h0_ref, wih_ref, whh_ref, bi_ref, bhn_ref,
                       wout_ref, bout_ref, logp_ref, hN_ref, h_ref, h_all_ref,
                       *, B, T):
    """GRU decoder forward for the whole sequence in one kernel invocation.

    x_ref     : (B*T, V)  flattened batch-first input, row = b*T + t
    h0_ref    : (B, H)    initial hidden state
    wih_ref   : (V, 3H)   W_ih^T, PyTorch gate order (r, z, n)
    whh_ref   : (H, 3H)   W_hh^T
    bi_ref    : (1, 3H)   [b_ih_r + b_hh_r, b_ih_z + b_hh_z, b_ih_n]
    bhn_ref   : (1, H)    b_hh_n (kept separate: it is scaled by r)
    wout_ref  : (H, V)    output projection W^T
    bout_ref  : (1, V)    output projection bias
    logp_ref  : (B*T, V)  output: log-softmax(logits)
    hN_ref    : (B, H)    output: final hidden state
    h_ref     : (B, H)    f32 scratch: current hidden state assembly buffer
    h_all_ref : (B*T, H)  f32 scratch: hidden states of every step
    """
    H = h0_ref.shape[-1]

    # ---- Phase 1: input projection for ALL timesteps in one MXU matmul ----
    gi = jnp.dot(x_ref[...], wih_ref[...],
                 preferred_element_type=jnp.float32) + bi_ref[...]      # (B*T, 3H)

    whh = whh_ref[...]          # hoisted, loop-invariant
    bhn = bhn_ref[...]

    # ---- Phase 2: sequential recurrence (only h @ W_hh^T per step) ----
    h = h0_ref[...].astype(jnp.float32)                                 # (B, H)
    for t in range(T):          # static unroll: T is small & compile-time known
        gh = jnp.dot(h, whh, preferred_element_type=jnp.float32)        # (B, 3H)
        for b in range(B):      # static unroll: keeps every slice static & 2-D
            row = b * T + t
            gi_bt = gi[row:row + 1, :]                                  # (1, 3H)
            gh_b = gh[b:b + 1, :]                                       # (1, 3H)
            h_b = h[b:b + 1, :]                                         # (1, H)
            # NOTE: gate slices below are sub-128-lane at H=32; at scaled H keep
            # each gate 128-lane aligned (or store gates with a leading gate dim).
            r = jax.nn.sigmoid(gi_bt[:, 0:H] + gh_b[:, 0:H])
            z = jax.nn.sigmoid(gi_bt[:, H:2 * H] + gh_b[:, H:2 * H])
            n = jnp.tanh(gi_bt[:, 2 * H:3 * H] + r * (gh_b[:, 2 * H:3 * H] + bhn))
            h_b_new = (1.0 - z) * n + z * h_b                           # (1, H)
            h_ref[b:b + 1, :] = h_b_new
            h_all_ref[row:row + 1, :] = h_b_new
        h = h_ref[...]                                                  # next-step state

    hN_ref[...] = h.astype(hN_ref.dtype)

    # ---- Phase 3: batched output projection + log-softmax (M = B*T rows) ----
    logits = jnp.dot(h_all_ref[...], wout_ref[...],
                     preferred_element_type=jnp.float32) + bout_ref[...]  # (B*T, V)
    m = jnp.max(logits, axis=-1, keepdims=True)
    shifted = logits - m
    lse = jnp.log(jnp.sum(jnp.exp(shifted), axis=-1, keepdims=True))
    logp_ref[...] = (shifted - lse).astype(logp_ref.dtype)


def decoder_forward(x, hidden, params):
    """x: (B, T, V) batch-first, hidden: (1, B, H). Returns (logit, new_hidden)."""
    B, T, V = x.shape
    H = hidden.shape[-1]

    x_flat = x.reshape(B * T, V)                 # free reshape, row = b*T + t
    h0 = hidden[0]                               # (B, H)
    wih_t = params["w_ih"].T                     # (V, 3H)
    whh_t = params["w_hh"].T                     # (H, 3H)
    b_ih, b_hh = params["b_ih"], params["b_hh"]
    # Fold biases: r,z gates use b_ih+b_hh; n gate keeps b_hh_n separate (scaled by r).
    bi = jnp.concatenate([b_ih[:2 * H] + b_hh[:2 * H], b_ih[2 * H:]]).reshape(1, 3 * H)
    bhn = b_hh[2 * H:].reshape(1, H)
    wout_t = params["w_out"].T                   # (H, V)
    bout = params["b_out"].reshape(1, V)

    grid_spec = pltpu.PrefetchScalarGridSpec(
        num_scalar_prefetch=0,
        grid=(1,),
        in_specs=[
            pl.BlockSpec((B * T, V), lambda i: (0, 0)),      # x (flattened)
            pl.BlockSpec((B, H), lambda i: (0, 0)),          # h0
            pl.BlockSpec((V, 3 * H), lambda i: (0, 0)),      # W_ih^T
            pl.BlockSpec((H, 3 * H), lambda i: (0, 0)),      # W_hh^T
            pl.BlockSpec((1, 3 * H), lambda i: (0, 0)),      # folded bias (r, z, n)
            pl.BlockSpec((1, H), lambda i: (0, 0)),          # b_hh_n
            pl.BlockSpec((H, V), lambda i: (0, 0)),          # W_out^T
            pl.BlockSpec((1, V), lambda i: (0, 0)),          # b_out
        ],
        out_specs=[
            pl.BlockSpec((B * T, V), lambda i: (0, 0)),      # log-probs
            pl.BlockSpec((B, H), lambda i: (0, 0)),          # final hidden
        ],
        scratch_shapes=[
            pltpu.VMEM((B, H), jnp.float32),                 # current hidden state
            pltpu.VMEM((B * T, H), jnp.float32),             # all per-step hidden states
        ],
    )

    kernel = functools.partial(gru_decoder_kernel, B=B, T=T)
    logp_flat, hN = pl.pallas_call(
        kernel,
        out_shape=(jax.ShapeDtypeStruct((B * T, V), jnp.float32),
                   jax.ShapeDtypeStruct((B, H), hidden.dtype)),
        grid_spec=grid_spec,
        compiler_params=pltpu.CompilerParams(dimension_semantics=("arbitrary",)),
    )(x_flat, h0, wih_t, whh_t, bi, bhn, wout_t, bout)

    logit = logp_flat.reshape(B, T, V)           # free reshape back to batch-first
    return logit, hN[None]                       # new_hidden: (1, B, H)


def init_params(key, vocab_size, hidden_size):
    """Deterministic init matching PyTorch GRU/Linear shapes (U(-1/sqrt(H), 1/sqrt(H)))."""
    k = 1.0 / np.sqrt(hidden_size)
    keys = jax.random.split(key, 6)
    return {
        "w_ih": jax.random.uniform(keys[0], (3 * hidden_size, vocab_size), jnp.float32, -k, k),
        "w_hh": jax.random.uniform(keys[1], (3 * hidden_size, hidden_size), jnp.float32, -k, k),
        "b_ih": jax.random.uniform(keys[2], (3 * hidden_size,), jnp.float32, -k, k),
        "b_hh": jax.random.uniform(keys[3], (3 * hidden_size,), jnp.float32, -k, k),
        "w_out": jax.random.uniform(keys[4], (vocab_size, hidden_size), jnp.float32, -k, k),
        "b_out": jax.random.uniform(keys[5], (vocab_size,), jnp.float32, -k, k),
    }


def decoder_forward_ref(x, hidden, params):
    """Pure-JAX reference of the PyTorch forward, for correctness checking."""
    H = hidden.shape[-1]
    wih_t, whh_t = params["w_ih"].T, params["w_hh"].T
    bih, bhh = params["b_ih"], params["b_hh"]

    def step(h, x_t):
        gi = x_t @ wih_t + bih
        gh = h @ whh_t + bhh
        r = jax.nn.sigmoid(gi[:, :H] + gh[:, :H])
        z = jax.nn.sigmoid(gi[:, H:2 * H] + gh[:, H:2 * H])
        n = jnp.tanh(gi[:, 2 * H:] + r * gh[:, 2 * H:])
        h_new = (1.0 - z) * n + z * h
        return h_new, h_new

    hN, outs = jax.lax.scan(step, hidden[0], jnp.transpose(x, (1, 0, 2)))
    outs = jnp.transpose(outs, (1, 0, 2))                       # (B, T, H)
    logits = outs @ params["w_out"].T + params["b_out"]
    return jax.nn.log_softmax(logits, axis=2), hN[None]


if __name__ == "__main__":
    B, T, V, H = 2, 8, 16, 32   # batch, seq, vocab_size, hidden_size

    key = jax.random.PRNGKey(0)
    k_par, k_x, k_h = jax.random.split(key, 3)
    params = init_params(k_par, V, H)
    x = jax.random.normal(k_x, (B, T, V), jnp.float32)
    hidden = jax.random.normal(k_h, (1, B, H), jnp.float32)

    logit, new_hidden = decoder_forward(x, hidden, params)
    jax.block_until_ready((logit, new_hidden))

    logit_ref, new_hidden_ref = decoder_forward_ref(x, hidden, params)
    np.testing.assert_allclose(np.asarray(logit), np.asarray(logit_ref), rtol=1e-5, atol=1e-5)
    np.testing.assert_allclose(np.asarray(new_hidden), np.asarray(new_hidden_ref), rtol=1e-5, atol=1e-5)

    print("KERNEL_OK")
</pallas_src>

<mosaic_0001>
module attributes {stable_mosaic.version = 11 : i64} {
  func.func @gru_decoder_kernel(%arg0: i32, %arg1: memref<16x16xf32, #tpu.memory_space<vmem>>, %arg2: memref<2x32xf32, #tpu.memory_space<vmem>>, %arg3: memref<16x96xf32, #tpu.memory_space<vmem>>, %arg4: memref<32x96xf32, #tpu.memory_space<vmem>>, %arg5: memref<1x96xf32, #tpu.memory_space<vmem>>, %arg6: memref<1x32xf32, #tpu.memory_space<vmem>>, %arg7: memref<32x16xf32, #tpu.memory_space<vmem>>, %arg8: memref<1x16xf32, #tpu.memory_space<vmem>>, %arg9: memref<16x16xf32, #tpu.memory_space<vmem>>, %arg10: memref<2x32xf32, #tpu.memory_space<vmem>>, %arg11: memref<2x32xf32, #tpu.memory_space<vmem>>, %arg12: memref<16x32xf32, #tpu.memory_space<vmem>>) attributes {dimension_semantics = [#tpu.dimension_semantics<arbitrary>], iteration_bounds = array<i64: 1>, scalar_prefetch = 0 : i64, scratch_operands = 2 : i64, tpu.core_type = #tpu.core_type<tc>, window_params = [{pipeline_mode = #tpu.pipeline_mode<synchronous>, transform_indices = @transform_0, window_bounds = array<i64: 16, 16>}, {pipeline_mode = #tpu.pipeline_mode<synchronous>, transform_indices = @transform_1, window_bounds = array<i64: 2, 32>}, {pipeline_mode = #tpu.pipeline_mode<synchronous>, transform_indices = @transform_2, window_bounds = array<i64: 16, 96>}, {pipeline_mode = #tpu.pipeline_mode<synchronous>, transform_indices = @transform_3, window_bounds = array<i64: 32, 96>}, {pipeline_mode = #tpu.pipeline_mode<synchronous>, transform_indices = @transform_4, window_bounds = array<i64: 1, 96>}, {pipeline_mode = #tpu.pipeline_mode<synchronous>, transform_indices = @transform_5, window_bounds = array<i64: 1, 32>}, {pipeline_mode = #tpu.pipeline_mode<synchronous>, transform_indices = @transform_6, window_bounds = array<i64: 32, 16>}, {pipeline_mode = #tpu.pipeline_mode<synchronous>, transform_indices = @transform_7, window_bounds = array<i64: 1, 16>}, {pipeline_mode = #tpu.pipeline_mode<synchronous>, transform_indices = @transform_8, window_bounds = array<i64: 16, 16>}, {pipeline_mode = #tpu.pipeline_mode<synchronous>, transform_indices = @transform_9, window_bounds = array<i64: 2, 32>}]} {
    %c0 = arith.constant 0 : index
    %c0_0 = arith.constant 0 : index
    %0 = vector.load %arg1[%c0, %c0_0] : memref<16x16xf32, #tpu.memory_space<vmem>>, vector<16x16xf32>
    %c0_1 = arith.constant 0 : index
    %c0_2 = arith.constant 0 : index
    %1 = vector.load %arg3[%c0_1, %c0_2] : memref<16x96xf32, #tpu.memory_space<vmem>>, vector<16x96xf32>
    %cst = arith.constant dense<0.000000e+00> : vector<16x96xf32>
    %2 = tpu.matmul %0, %1, %cst {dimension_numbers = #tpu.dot_dimension_numbers<[1], [0], [0], [1], [0, 0, 1, 1], [], []>} : vector<16x16xf32>, vector<16x96xf32>, vector<16x96xf32> -> vector<16x96xf32>
    %c0_3 = arith.constant 0 : index
    %c0_4 = arith.constant 0 : index
    %3 = vector.load %arg5[%c0_3, %c0_4] : memref<1x96xf32, #tpu.memory_space<vmem>>, vector<1x96xf32>
    %4 = vector.broadcast %3 : vector<1x96xf32> to vector<16x96xf32>
    %5 = arith.addf %2, %4 : vector<16x96xf32>
    %c0_5 = arith.constant 0 : index
    %c0_6 = arith.constant 0 : index
    %6 = vector.load %arg4[%c0_5, %c0_6] : memref<32x96xf32, #tpu.memory_space<vmem>>, vector<32x96xf32>
    %c0_7 = arith.constant 0 : index
    %c0_8 = arith.constant 0 : index
    %7 = vector.load %arg6[%c0_7, %c0_8] : memref<1x32xf32, #tpu.memory_space<vmem>>, vector<1x32xf32>
    %c0_9 = arith.constant 0 : index
    %c0_10 = arith.constant 0 : index
    %8 = vector.load %arg2[%c0_9, %c0_10] : memref<2x32xf32, #tpu.memory_space<vmem>>, vector<2x32xf32>
    %cst_11 = arith.constant dense<0.000000e+00> : vector<2x96xf32>
    %9 = tpu.matmul %8, %6, %cst_11 {dimension_numbers = #tpu.dot_dimension_numbers<[1], [0], [0], [1], [0, 0, 1, 1], [], []>} : vector<2x32xf32>, vector<32x96xf32>, vector<2x96xf32> -> vector<2x96xf32>
    %10 = vector.extract_strided_slice %5 {offsets = [0, 0], sizes = [1, 96], strides = [1, 1]} : vector<16x96xf32> to vector<1x96xf32>
    %11 = vector.extract_strided_slice %9 {offsets = [0, 0], sizes = [1, 96], strides = [1, 1]} : vector<2x96xf32> to vector<1x96xf32>
    %12 = vector.extract_strided_slice %8 {offsets = [0, 0], sizes = [1, 32], strides = [1, 1]} : vector<2x32xf32> to vector<1x32xf32>
    %13 = vector.extract_strided_slice %10 {offsets = [0, 0], sizes = [1, 32], strides = [1, 1]} : vector<1x96xf32> to vector<1x32xf32>
    %14 = vector.extract_strided_slice %11 {offsets = [0, 0], sizes = [1, 32], strides = [1, 1]} : vector<1x96xf32> to vector<1x32xf32>
    %15 = arith.addf %13, %14 : vector<1x32xf32>
    %16 = arith.negf %15 : vector<1x32xf32>
    %17 = math.exp %16 : vector<1x32xf32>
    %cst_12 = arith.constant 1.000000e+00 : f32
    %18 = vector.broadcast %cst_12 : f32 to vector<1x32xf32>
    %19 = arith.addf %18, %17 : vector<1x32xf32>
    %20 = arith.divf %18, %19 : vector<1x32xf32>
    %21 = vector.extract_strided_slice %10 {offsets = [0, 32], sizes = [1, 32], strides = [1, 1]} : vector<1x96xf32> to vector<1x32xf32>
    %22 = vector.extract_strided_slice %11 {offsets = [0, 32], sizes = [1, 32], strides = [1, 1]} : vector<1x96xf32> to vector<1x32xf32>
    %23 = arith.addf %21, %22 : vector<1x32xf32>
    %24 = arith.negf %23 : vector<1x32xf32>
    %25 = math.exp %24 : vector<1x32xf32>
    %cst_13 = arith.constant 1.000000e+00 : f32
    %26 = vector.broadcast %cst_13 : f32 to vector<1x32xf32>
    %27 = arith.addf %26, %25 : vector<1x32xf32>
    %28 = arith.divf %26, %27 : vector<1x32xf32>
    %29 = vector.extract_strided_slice %10 {offsets = [0, 64], sizes = [1, 32], strides = [1, 1]} : vector<1x96xf32> to vector<1x32xf32>
    %30 = vector.extract_strided_slice %11 {offsets = [0, 64], sizes = [1, 32], strides = [1, 1]} : vector<1x96xf32> to vector<1x32xf32>
    %31 = arith.addf %30, %7 : vector<1x32xf32>
    %32 = arith.mulf %20, %31 : vector<1x32xf32>
    %33 = arith.addf %29, %32 : vector<1x32xf32>
    %34 = math.tanh %33 : vector<1x32xf32>
    %cst_14 = arith.constant 1.000000e+00 : f32
    %35 = vector.broadcast %cst_14 : f32 to vector<1x32xf32>
    %36 = arith.subf %35, %28 : vector<1x32xf32>
    %37 = arith.mulf %36, %34 : vector<1x32xf32>
    %38 = arith.mulf %28, %12 : vector<1x32xf32>
    %39 = arith.addf %37, %38 : vector<1x32xf32>
    %c0_15 = arith.constant 0 : index
    %c0_16 = arith.constant 0 : index
    %40 = vector.load %arg11[%c0_15, %c0_16] : memref<2x32xf32, #tpu.memory_space<vmem>>, vector<1x32xf32>
    tpu.vector_store %arg11[%c0_15, %c0_16], %39 {strides = array<i32>} : memref<2x32xf32, #tpu.memory_space<vmem>>, vector<1x32xf32>,
    %c0_17 = arith.constant 0 : index
    %c0_18 = arith.constant 0 : index
    %41 = vector.load %arg12[%c0_17, %c0_18] : memref<16x32xf32, #tpu.memory_space<vmem>>, vector<1x32xf32>
    tpu.vector_store %arg12[%c0_17, %c0_18], %39 {strides = array<i32>} : memref<16x32xf32, #tpu.memory_space<vmem>>, vector<1x32xf32>,
    %42 = vector.extract_strided_slice %5 {offsets = [8, 0], sizes = [1, 96], strides = [1, 1]} : vector<16x96xf32> to vector<1x96xf32>
    %43 = vector.extract_strided_slice %9 {offsets = [1, 0], sizes = [1, 96], strides = [1, 1]} : vector<2x96xf32> to vector<1x96xf32>
    %44 = vector.extract_strided_slice %8 {offsets = [1, 0], sizes = [1, 32], strides = [1, 1]} : vector<2x32xf32> to vector<1x32xf32>
    %45 = vector.extract_strided_slice %42 {offsets = [0, 0], sizes = [1, 32], strides = [1, 1]} : vector<1x96xf32> to vector<1x32xf32>
    %46 = vector.extract_strided_slice %43 {offsets = [0, 0], sizes = [1, 32], strides = [1, 1]} : vector<1x96xf32> to vector<1x32xf32>
    %47 = arith.addf %45, %46 : vector<1x32xf32>
    %48 = arith.negf %47 : vector<1x32xf32>
    %49 = math.exp %48 : vector<1x32xf32>
    %cst_19 = arith.constant 1.000000e+00 : f32
    %50 = vector.broadcast %cst_19 : f32 to vector<1x32xf32>
    %51 = arith.addf %50, %49 : vector<1x32xf32>
    %52 = arith.divf %50, %51 : vector<1x32xf32>
    %53 = vector.extract_strided_slice %42 {offsets = [0, 32], sizes = [1, 32], strides = [1, 1]} : vector<1x96xf32> to vector<1x32xf32>
    %54 = vector.extract_strided_slice %43 {offsets = [0, 32], sizes = [1, 32], strides = [1, 1]} : vector<1x96xf32> to vector<1x32xf32>
    %55 = arith.addf %53, %54 : vector<1x32xf32>
    %56 = arith.negf %55 : vector<1x32xf32>
    %57 = math.exp %56 : vector<1x32xf32>
    %cst_20 = arith.constant 1.000000e+00 : f32
    %58 = vector.broadcast %cst_20 : f32 to vector<1x32xf32>
    %59 = arith.addf %58, %57 : vector<1x32xf32>
    %60 = arith.divf %58, %59 : vector<1x32xf32>
    %61 = vector.extract_strided_slice %42 {offsets = [0, 64], sizes = [1, 32], strides = [1, 1]} : vector<1x96xf32> to vector<1x32xf32>
    %62 = vector.extract_strided_slice %43 {offsets = [0, 64], sizes = [1, 32], strides = [1, 1]} : vector<1x96xf32> to vector<1x32xf32>
    %63 = arith.addf %62, %7 : vector<1x32xf32>
    %64 = arith.mulf %52, %63 : vector<1x32xf32>
    %65 = arith.addf %61, %64 : vector<1x32xf32>
    %66 = math.tanh %65 : vector<1x32xf32>
    %cst_21 = arith.constant 1.000000e+00 : f32
    %67 = vector.broadcast %cst_21 : f32 to vector<1x32xf32>
    %68 = arith.subf %67, %60 : vector<1x32xf32>
    %69 = arith.mulf %68, %66 : vector<1x32xf32>
    %70 = arith.mulf %60, %44 : vector<1x32xf32>
    %71 = arith.addf %69, %70 : vector<1x32xf32>
    %c1 = arith.constant 1 : index
    %c0_22 = arith.constant 0 : index
    %72 = vector.load %arg11[%c1, %c0_22] : memref<2x32xf32, #tpu.memory_space<vmem>>, vector<1x32xf32>
    tpu.vector_store %arg11[%c1, %c0_22], %71 {strides = array<i32>} : memref<2x32xf32, #tpu.memory_space<vmem>>, vector<1x32xf32>,
    %c8 = arith.constant 8 : index
    %c0_23 = arith.constant 0 : index
    %73 = vector.load %arg12[%c8, %c0_23] : memref<16x32xf32, #tpu.memory_space<vmem>>, vector<1x32xf32>
    tpu.vector_store %arg12[%c8, %c0_23], %71 {strides = array<i32>} : memref<16x32xf32, #tpu.memory_space<vmem>>, vector<1x32xf32>,
    %c0_24 = arith.constant 0 : index
    %c0_25 = arith.constant 0 : index
    %74 = vector.load %arg11[%c0_24, %c0_25] : memref<2x32xf32, #tpu.memory_space<vmem>>, vector<2x32xf32>
    %cst_26 = arith.constant dense<0.000000e+00> : vector<2x96xf32>
    %75 = tpu.matmul %74, %6, %cst_26 {dimension_numbers = #tpu.dot_dimension_numbers<[1], [0], [0], [1], [0, 0, 1, 1], [], []>} : vector<2x32xf32>, vector<32x96xf32>, vector<2x96xf32> -> vector<2x96xf32>
    %76 = vector.extract_strided_slice %5 {offsets = [1, 0], sizes = [1, 96], strides = [1, 1]} : vector<16x96xf32> to vector<1x96xf32>
    %77 = vector.extract_strided_slice %75 {offsets = [0, 0], sizes = [1, 96], strides = [1, 1]} : vector<2x96xf32> to vector<1x96xf32>
    %78 = vector.extract_strided_slice %74 {offsets = [0, 0], sizes = [1, 32], strides = [1, 1]} : vector<2x32xf32> to vector<1x32xf32>
    %79 = vector.extract_strided_slice %76 {offsets = [0, 0], sizes = [1, 32], strides = [1, 1]} : vector<1x96xf32> to vector<1x32xf32>
    %80 = vector.extract_strided_slice %77 {offsets = [0, 0], sizes = [1, 32], strides = [1, 1]} : vector<1x96xf32> to vector<1x32xf32>
    %81 = arith.addf %79, %80 : vector<1x32xf32>
    %82 = arith.negf %81 : vector<1x32xf32>
    %83 = math.exp %82 : vector<1x32xf32>
    %cst_27 = arith.constant 1.000000e+00 : f32
    %84 = vector.broadcast %cst_27 : f32 to vector<1x32xf32>
    %85 = arith.addf %84, %83 : vector<1x32xf32>
    %86 = arith.divf %84, %85 : vector<1x32xf32>
    %87 = vector.extract_strided_slice %76 {offsets = [0, 32], sizes = [1, 32], strides = [1, 1]} : vector<1x96xf32> to vector<1x32xf32>
    %88 = vector.extract_strided_slice %77 {offsets = [0, 32], sizes = [1, 32], strides = [1, 1]} : vector<1x96xf32> to vector<1x32xf32>
    %89 = arith.addf %87, %88 : vector<1x32xf32>
    %90 = arith.negf %89 : vector<1x32xf32>
    %91 = math.exp %90 : vector<1x32xf32>
    %cst_28 = arith.constant 1.000000e+00 : f32
    %92 = vector.broadcast %cst_28 : f32 to vector<1x32xf32>
    %93 = arith.addf %92, %91 : vector<1x32xf32>
    %94 = arith.divf %92, %93 : vector<1x32xf32>
    %95 = vector.extract_strided_slice %76 {offsets = [0, 64], sizes = [1, 32], strides = [1, 1]} : vector<1x96xf32> to vector<1x32xf32>
    %96 = vector.extract_strided_slice %77 {offsets = [0, 64], sizes = [1, 32], strides = [1, 1]} : vector<1x96xf32> to vector<1x32xf32>
    %97 = arith.addf %96, %7 : vector<1x32xf32>
    %98 = arith.mulf %86, %97 : vector<1x32xf32>
    %99 = arith.addf %95, %98 : vector<1x32xf32>
    %100 = math.tanh %99 : vector<1x32xf32>
    %cst_29 = arith.constant 1.000000e+00 : f32
    %101 = vector.broadcast %cst_29 : f32 to vector<1x32xf32>
    %102 = arith.subf %101, %94 : vector<1x32xf32>
    %103 = arith.mulf %102, %100 : vector<1x32xf32>
    %104 = arith.mulf %94, %78 : vector<1x32xf32>
    %105 = arith.addf %103, %104 : vector<1x32xf32>
    %c0_30 = arith.constant 0 : index
    %c0_31 = arith.constant 0 : index
    %106 = vector.load %arg11[%c0_30, %c0_31] : memref<2x32xf32, #tpu.memory_space<vmem>>, vector<1x32xf32>
    tpu.vector_store %arg11[%c0_30, %c0_31], %105 {strides = array<i32>} : memref<2x32xf32, #tpu.memory_space<vmem>>, vector<1x32xf32>,
    %c1_32 = arith.constant 1 : index
    %c0_33 = arith.constant 0 : index
    %107 = vector.load %arg12[%c1_32, %c0_33] : memref<16x32xf32, #tpu.memory_space<vmem>>, vector<1x32xf32>
    tpu.vector_store %arg12[%c1_32, %c0_33], %105 {strides = array<i32>} : memref<16x32xf32, #tpu.memory_space<vmem>>, vector<1x32xf32>,
    %108 = vector.extract_strided_slice %5 {offsets = [9, 0], sizes = [1, 96], strides = [1, 1]} : vector<16x96xf32> to vector<1x96xf32>
    %109 = vector.extract_strided_slice %75 {offsets = [1, 0], sizes = [1, 96], strides = [1, 1]} : vector<2x96xf32> to vector<1x96xf32>
    %110 = vector.extract_strided_slice %74 {offsets = [1, 0], sizes = [1, 32], strides = [1, 1]} : vector<2x32xf32> to vector<1x32xf32>
    %111 = vector.extract_strided_slice %108 {offsets = [0, 0], sizes = [1, 32], strides = [1, 1]} : vector<1x96xf32> to vector<1x32xf32>
    %112 = vector.extract_strided_slice %109 {offsets = [0, 0], sizes = [1, 32], strides = [1, 1]} : vector<1x96xf32> to vector<1x32xf32>
    %113 = arith.addf %111, %112 : vector<1x32xf32>
    %114 = arith.negf %113 : vector<1x32xf32>
    %115 = math.exp %114 : vector<1x32xf32>
    %cst_34 = arith.constant 1.000000e+00 : f32
    %116 = vector.broadcast %cst_34 : f32 to vector<1x32xf32>
    %117 = arith.addf %116, %115 : vector<1x32xf32>
    %118 = arith.divf %116, %117 : vector<1x32xf32>
    %119 = vector.extract_strided_slice %108 {offsets = [0, 32], sizes = [1, 32], strides = [1, 1]} : vector<1x96xf32> to vector<1x32xf32>
    %120 = vector.extract_strided_slice %109 {offsets = [0, 32], sizes = [1, 32], strides = [1, 1]} : vector<1x96xf32> to vector<1x32xf32>
    %121 = arith.addf %119, %120 : vector<1x32xf32>
    %122 = arith.negf %121 : vector<1x32xf32>
    %123 = math.exp %122 : vector<1x32xf32>
    %cst_35 = arith.constant 1.000000e+00 : f32
    %124 = vector.broadcast %cst_35 : f32 to vector<1x32xf32>
    %125 = arith.addf %124, %123 : vector<1x32xf32>
    %126 = arith.divf %124, %125 : vector<1x32xf32>
    %127 = vector.extract_strided_slice %108 {offsets = [0, 64], sizes = [1, 32], strides = [1, 1]} : vector<1x96xf32> to vector<1x32xf32>
    %128 = vector.extract_strided_slice %109 {offsets = [0, 64], sizes = [1, 32], strides = [1, 1]} : vector<1x96xf32> to vector<1x32xf32>
    %129 = arith.addf %128, %7 : vector<1x32xf32>
    %130 = arith.mulf %118, %129 : vector<1x32xf32>
    %131 = arith.addf %127, %130 : vector<1x32xf32>
    %132 = math.tanh %131 : vector<1x32xf32>
    %cst_36 = arith.constant 1.000000e+00 : f32
    %133 = vector.broadcast %cst_36 : f32 to vector<1x32xf32>
    %134 = arith.subf %133, %126 : vector<1x32xf32>
    %135 = arith.mulf %134, %132 : vector<1x32xf32>
    %136 = arith.mulf %126, %110 : vector<1x32xf32>
    %137 = arith.addf %135, %136 : vector<1x32xf32>
    %c1_37 = arith.constant 1 : index
    %c0_38 = arith.constant 0 : index
    %138 = vector.load %arg11[%c1_37, %c0_38] : memref<2x32xf32, #tpu.memory_space<vmem>>, vector<1x32xf32>
    tpu.vector_store %arg11[%c1_37, %c0_38], %137 {strides = array<i32>} : memref<2x32xf32, #tpu.memory_space<vmem>>, vector<1x32xf32>,
    %c9 = arith.constant 9 : index
    %c0_39 = arith.constant 0 : index
    %139 = vector.load %arg12[%c9, %c0_39] : memref<16x32xf32, #tpu.memory_space<vmem>>, vector<1x32xf32>
    tpu.vector_store %arg12[%c9, %c0_39], %137 {strides = array<i32>} : memref<16x32xf32, #tpu.memory_space<vmem>>, vector<1x32xf32>,
    %c0_40 = arith.constant 0 : index
    %c0_41 = arith.constant 0 : index
    %140 = vector.load %arg11[%c0_40, %c0_41] : memref<2x32xf32, #tpu.memory_space<vmem>>, vector<2x32xf32>
    %cst_42 = arith.constant dense<0.000000e+00> : vector<2x96xf32>
    %141 = tpu.matmul %140, %6, %cst_42 {dimension_numbers = #tpu.dot_dimension_numbers<[1], [0], [0], [1], [0, 0, 1, 1], [], []>} : vector<2x32xf32>, vector<32x96xf32>, vector<2x96xf32> -> vector<2x96xf32>
    %142 = vector.extract_strided_slice %5 {offsets = [2, 0], sizes = [1, 96], strides = [1, 1]} : vector<16x96xf32> to vector<1x96xf32>
    %143 = vector.extract_strided_slice %141 {offsets = [0, 0], sizes = [1, 96], strides = [1, 1]} : vector<2x96xf32> to vector<1x96xf32>
    %144 = vector.extract_strided_slice %140 {offsets = [0, 0], sizes = [1, 32], strides = [1, 1]} : vector<2x32xf32> to vector<1x32xf32>
    %145 = vector.extract_strided_slice %142 {offsets = [0, 0], sizes = [1, 32], strides = [1, 1]} : vector<1x96xf32> to vector<1x32xf32>
    %146 = vector.extract_strided_slice %143 {offsets = [0, 0], sizes = [1, 32], strides = [1, 1]} : vector<1x96xf32> to vector<1x32xf32>
    %147 = arith.addf %145, %146 : vector<1x32xf32>
    %148 = arith.negf %147 : vector<1x32xf32>
    %149 = math.exp %148 : vector<1x32xf32>
    %cst_43 = arith.constant 1.000000e+00 : f32
    %150 = vector.broadcast %cst_43 : f32 to vector<1x32xf32>
    %151 = arith.addf %150, %149 : vector<1x32xf32>
    %152 = arith.divf %150, %151 : vector<1x32xf32>
    %153 = vector.extract_strided_slice %142 {offsets = [0, 32], sizes = [1, 32], strides = [1, 1]} : vector<1x96xf32> to vector<1x32xf32>
    %154 = vector.extract_strided_slice %143 {offsets = [0, 32], sizes = [1, 32], strides = [1, 1]} : vector<1x96xf32> to vector<1x32xf32>
    %155 = arith.addf %153, %154 : vector<1x32xf32>
    %156 = arith.negf %155 : vector<1x32xf32>
    %157 = math.exp %156 : vector<1x32xf32>
    %cst_44 = arith.constant 1.000000e+00 : f32
    %158 = vector.broadcast %cst_44 : f32 to vector<1x32xf32>
    %159 = arith.addf %158, %157 : vector<1x32xf32>
    %160 = arith.divf %158, %159 : vector<1x32xf32>
    %161 = vector.extract_strided_slice %142 {offsets = [0, 64], sizes = [1, 32], strides = [1, 1]} : vector<1x96xf32> to vector<1x32xf32>
    %162 = vector.extract_strided_slice %143 {offsets = [0, 64], sizes = [1, 32], strides = [1, 1]} : vector<1x96xf32> to vector<1x32xf32>
    %163 = arith.addf %162, %7 : vector<1x32xf32>
    %164 = arith.mulf %152, %163 : vector<1x32xf32>
    %165 = arith.addf %161, %164 : vector<1x32xf32>
    %166 = math.tanh %165 : vector<1x32xf32>
    %cst_45 = arith.constant 1.000000e+00 : f32
    %167 = vector.broadcast %cst_45 : f32 to vector<1x32xf32>
    %168 = arith.subf %167, %160 : vector<1x32xf32>
    %169 = arith.mulf %168, %166 : vector<1x32xf32>
    %170 = arith.mulf %160, %144 : vector<1x32xf32>
    %171 = arith.addf %169, %170 : vector<1x32xf32>
    %c0_46 = arith.constant 0 : index
    %c0_47 = arith.constant 0 : index
    %172 = vector.load %arg11[%c0_46, %c0_47] : memref<2x32xf32, #tpu.memory_space<vmem>>, vector<1x32xf32>
    tpu.vector_store %arg11[%c0_46, %c0_47], %171 {strides = array<i32>} : memref<2x32xf32, #tpu.memory_space<vmem>>, vector<1x32xf32>,
    %c2 = arith.constant 2 : index
    %c0_48 = arith.constant 0 : index
    %173 = vector.load %arg12[%c2, %c0_48] : memref<16x32xf32, #tpu.memory_space<vmem>>, vector<1x32xf32>
    tpu.vector_store %arg12[%c2, %c0_48], %171 {strides = array<i32>} : memref<16x32xf32, #tpu.memory_space<vmem>>, vector<1x32xf32>,
    %174 = vector.extract_strided_slice %5 {offsets = [10, 0], sizes = [1, 96], strides = [1, 1]} : vector<16x96xf32> to vector<1x96xf32>
    %175 = vector.extract_strided_slice %141 {offsets = [1, 0], sizes = [1, 96], strides = [1, 1]} : vector<2x96xf32> to vector<1x96xf32>
    %176 = vector.extract_strided_slice %140 {offsets = [1, 0], sizes = [1, 32], strides = [1, 1]} : vector<2x32xf32> to vector<1x32xf32>
    %177 = vector.extract_strided_slice %174 {offsets = [0, 0], sizes = [1, 32], strides = [1, 1]} : vector<1x96xf32> to vector<1x32xf32>
    %178 = vector.extract_strided_slice %175 {offsets = [0, 0], sizes = [1, 32], strides = [1, 1]} : vector<1x96xf32> to vector<1x32xf32>
    %179 = arith.addf %177, %178 : vector<1x32xf32>
    %180 = arith.negf %179 : vector<1x32xf32>
    %181 = math.exp %180 : vector<1x32xf32>
    %cst_49 = arith.constant 1.000000e+00 : f32
    %182 = vector.broadcast %cst_49 : f32 to vector<1x32xf32>
    %183 = arith.addf %182, %181 : vector<1x32xf32>
    %184 = arith.divf %182, %183 : vector<1x32xf32>
    %185 = vector.extract_strided_slice %174 {offsets = [0, 32], sizes = [1, 32], strides = [1, 1]} : vector<1x96xf32> to vector<1x32xf32>
    %186 = vector.extract_strided_slice %175 {offsets = [0, 32], sizes = [1, 32], strides = [1, 1]} : vector<1x96xf32> to vector<1x32xf32>
    %187 = arith.addf %185, %186 : vector<1x32xf32>
    %188 = arith.negf %187 : vector<1x32xf32>
    %189 = math.exp %188 : vector<1x32xf32>
    %cst_50 = arith.constant 1.000000e+00 : f32
    %190 = vector.broadcast %cst_50 : f32 to vector<1x32xf32>
    %191 = arith.addf %190, %189 : vector<1x32xf32>
    %192 = arith.divf %190, %191 : vector<1x32xf32>
    %193 = vector.extract_strided_slice %174 {offsets = [0, 64], sizes = [1, 32], strides = [1, 1]} : vector<1x96xf32> to vector<1x32xf32>
    %194 = vector.extract_strided_slice %175 {offsets = [0, 64], sizes = [1, 32], strides = [1, 1]} : vector<1x96xf32> to vector<1x32xf32>
    %195 = arith.addf %194, %7 : vector<1x32xf32>
    %196 = arith.mulf %184, %195 : vector<1x32xf32>
    %197 = arith.addf %193, %196 : vector<1x32xf32>
    %198 = math.tanh %197 : vector<1x32xf32>
    %cst_51 = arith.constant 1.000000e+00 : f32
    %199 = vector.broadcast %cst_51 : f32 to vector<1x32xf32>
    %200 = arith.subf %199, %192 : vector<1x32xf32>
    %201 = arith.mulf %200, %198 : vector<1x32xf32>
    %202 = arith.mulf %192, %176 : vector<1x32xf32>
    %203 = arith.addf %201, %202 : vector<1x32xf32>
    %c1_52 = arith.constant 1 : index
    %c0_53 = arith.constant 0 : index
    %204 = vector.load %arg11[%c1_52, %c0_53] : memref<2x32xf32, #tpu.memory_space<vmem>>, vector<1x32xf32>
    tpu.vector_store %arg11[%c1_52, %c0_53], %203 {strides = array<i32>} : memref<2x32xf32, #tpu.memory_space<vmem>>, vector<1x32xf32>,
    %c10 = arith.constant 10 : index
    %c0_54 = arith.constant 0 : index
    %205 = vector.load %arg12[%c10, %c0_54] : memref<16x32xf32, #tpu.memory_space<vmem>>, vector<1x32xf32>
    tpu.vector_store %arg12[%c10, %c0_54], %203 {strides = array<i32>} : memref<16x32xf32, #tpu.memory_space<vmem>>, vector<1x32xf32>,
    %c0_55 = arith.constant 0 : index
    %c0_56 = arith.constant 0 : index
    %206 = vector.load %arg11[%c0_55, %c0_56] : memref<2x32xf32, #tpu.memory_space<vmem>>, vector<2x32xf32>
    %cst_57 = arith.constant dense<0.000000e+00> : vector<2x96xf32>
    %207 = tpu.matmul %206, %6, %cst_57 {dimension_numbers = #tpu.dot_dimension_numbers<[1], [0], [0], [1], [0, 0, 1, 1], [], []>} : vector<2x32xf32>, vector<32x96xf32>, vector<2x96xf32> -> vector<2x96xf32>
    %208 = vector.extract_strided_slice %5 {offsets = [3, 0], sizes = [1, 96], strides = [1, 1]} : vector<16x96xf32> to vector<1x96xf32>
    %209 = vector.extract_strided_slice %207 {offsets = [0, 0], sizes = [1, 96], strides = [1, 1]} : vector<2x96xf32> to vector<1x96xf32>
    %210 = vector.extract_strided_slice %206 {offsets = [0, 0], sizes = [1, 32], strides = [1, 1]} : vector<2x32xf32> to vector<1x32xf32>
    %211 = vector.extract_strided_slice %208 {offsets = [0, 0], sizes = [1, 32], strides = [1, 1]} : vector<1x96xf32> to vector<1x32xf32>
    %212 = vector.extract_strided_slice %209 {offsets = [0, 0], sizes = [1, 32], strides = [1, 1]} : vector<1x96xf32> to vector<1x32xf32>
    %213 = arith.addf %211, %212 : vector<1x32xf32>
    %214 = arith.negf %213 : vector<1x32xf32>
    %215 = math.exp %214 : vector<1x32xf32>
    %cst_58 = arith.constant 1.000000e+00 : f32
    %216 = vector.broadcast %cst_58 : f32 to vector<1x32xf32>
    %217 = arith.addf %216, %215 : vector<1x32xf32>
    %218 = arith.divf %216, %217 : vector<1x32xf32>
    %219 = vector.extract_strided_slice %208 {offsets = [0, 32], sizes = [1, 32], strides = [1, 1]} : vector<1x96xf32> to vector<1x32xf32>
    %220 = vector.extract_strided_slice %209 {offsets = [0, 32], sizes = [1, 32], strides = [1, 1]} : vector<1x96xf32> to vector<1x32xf32>
    %221 = arith.addf %219, %220 : vector<1x32xf32>
    %222 = arith.negf %221 : vector<1x32xf32>
    %223 = math.exp %222 : vector<1x32xf32>
    %cst_59 = arith.constant 1.000000e+00 : f32
    %224 = vector.broadcast %cst_59 : f32 to vector<1x32xf32>
    %225 = arith.addf %224, %223 : vector<1x32xf32>
    %226 = arith.divf %224, %225 : vector<1x32xf32>
    %227 = vector.extract_strided_slice %208 {offsets = [0, 64], sizes = [1, 32], strides = [1, 1]} : vector<1x96xf32> to vector<1x32xf32>
    %228 = vector.extract_strided_slice %209 {offsets = [0, 64], sizes = [1, 32], strides = [1, 1]} : vector<1x96xf32> to vector<1x32xf32>
    %229 = arith.addf %228, %7 : vector<1x32xf32>
    %230 = arith.mulf %218, %229 : vector<1x32xf32>
    %231 = arith.addf %227, %230 : vector<1x32xf32>
    %232 = math.tanh %231 : vector<1x32xf32>
    %cst_60 = arith.constant 1.000000e+00 : f32
    %233 = vector.broadcast %cst_60 : f32 to vector<1x32xf32>
    %234 = arith.subf %233, %226 : vector<1x32xf32>
    %235 = arith.mulf %234, %232 : vector<1x32xf32>
    %236 = arith.mulf %226, %210 : vector<1x32xf32>
    %237 = arith.addf %235, %236 : vector<1x32xf32>
    %c0_61 = arith.constant 0 : index
    %c0_62 = arith.constant 0 : index
    %238 = vector.load %arg11[%c0_61, %c0_62] : memref<2x32xf32, #tpu.memory_space<vmem>>, vector<1x32xf32>
    tpu.vector_store %arg11[%c0_61, %c0_62], %237 {strides = array<i32>} : memref<2x32xf32, #tpu.memory_space<vmem>>, vector<1x32xf32>,
    %c3 = arith.constant 3 : index
    %c0_63 = arith.constant 0 : index
    %239 = vector.load %arg12[%c3, %c0_63] : memref<16x32xf32, #tpu.memory_space<vmem>>, vector<1x32xf32>
    tpu.vector_store %arg12[%c3, %c0_63], %237 {strides = array<i32>} : memref<16x32xf32, #tpu.memory_space<vmem>>, vector<1x32xf32>,
    %240 = vector.extract_strided_slice %5 {offsets = [11, 0], sizes = [1, 96], strides = [1, 1]} : vector<16x96xf32> to vector<1x96xf32>
    %241 = vector.extract_strided_slice %207 {offsets = [1, 0], sizes = [1, 96], strides = [1, 1]} : vector<2x96xf32> to vector<1x96xf32>
    %242 = vector.extract_strided_slice %206 {offsets = [1, 0], sizes = [1, 32], strides = [1, 1]} : vector<2x32xf32> to vector<1x32xf32>
    %243 = vector.extract_strided_slice %240 {offsets = [0, 0], sizes = [1, 32], strides = [1, 1]} : vector<1x96xf32> to vector<1x32xf32>
    %244 = vector.extract_strided_slice %241 {offsets = [0, 0], sizes = [1, 32], strides = [1, 1]} : vector<1x96xf32> to vector<1x32xf32>
    %245 = arith.addf %243, %244 : vector<1x32xf32>
    %246 = arith.negf %245 : vector<1x32xf32>
    %247 = math.exp %246 : vector<1x32xf32>
    %cst_64 = arith.constant 1.000000e+00 : f32
    %248 = vector.broadcast %cst_64 : f32 to vector<1x32xf32>
    %249 = arith.addf %248, %247 : vector<1x32xf32>
    %250 = arith.divf %248, %249 : vector<1x32xf32>
    %251 = vector.extract_strided_slice %240 {offsets = [0, 32], sizes = [1, 32], strides = [1, 1]} : vector<1x96xf32> to vector<1x32xf32>
    %252 = vector.extract_strided_slice %241 {offsets = [0, 32], sizes = [1, 32], strides = [1, 1]} : vector<1x96xf32> to vector<1x32xf32>
    %253 = arith.addf %251, %252 : vector<1x32xf32>
    %254 = arith.negf %253 : vector<1x32xf32>
    %255 = math.exp %254 : vector<1x32xf32>
    %cst_65 = arith.constant 1.000000e+00 : f32
    %256 = vector.broadcast %cst_65 : f32 to vector<1x32xf32>
    %257 = arith.addf %256, %255 : vector<1x32xf32>
    %258 = arith.divf %256, %257 : vector<1x32xf32>
    %259 = vector.extract_strided_slice %240 {offsets = [0, 64], sizes = [1, 32], strides = [1, 1]} : vector<1x96xf32> to vector<1x32xf32>
    %260 = vector.extract_strided_slice %241 {offsets = [0, 64], sizes = [1, 32], strides = [1, 1]} : vector<1x96xf32> to vector<1x32xf32>
    %261 = arith.addf %260, %7 : vector<1x32xf32>
    %262 = arith.mulf %250, %261 : vector<1x32xf32>
    %263 = arith.addf %259, %262 : vector<1x32xf32>
    %264 = math.tanh %263 : vector<1x32xf32>
    %cst_66 = arith.constant 1.000000e+00 : f32
    %265 = vector.broadcast %cst_66 : f32 to vector<1x32xf32>
    %266 = arith.subf %265, %258 : vector<1x32xf32>
    %267 = arith.mulf %266, %264 : vector<1x32xf32>
    %268 = arith.mulf %258, %242 : vector<1x32xf32>
    %269 = arith.addf %267, %268 : vector<1x32xf32>
    %c1_67 = arith.constant 1 : index
    %c0_68 = arith.constant 0 : index
    %270 = vector.load %arg11[%c1_67, %c0_68] : memref<2x32xf32, #tpu.memory_space<vmem>>, vector<1x32xf32>
    tpu.vector_store %arg11[%c1_67, %c0_68], %269 {strides = array<i32>} : memref<2x32xf32, #tpu.memory_space<vmem>>, vector<1x32xf32>,
    %c11 = arith.constant 11 : index
    %c0_69 = arith.constant 0 : index
    %271 = vector.load %arg12[%c11, %c0_69] : memref<16x32xf32, #tpu.memory_space<vmem>>, vector<1x32xf32>
    tpu.vector_store %arg12[%c11, %c0_69], %269 {strides = array<i32>} : memref<16x32xf32, #tpu.memory_space<vmem>>, vector<1x32xf32>,
    %c0_70 = arith.constant 0 : index
    %c0_71 = arith.constant 0 : index
    %272 = vector.load %arg11[%c0_70, %c0_71] : memref<2x32xf32, #tpu.memory_space<vmem>>, vector<2x32xf32>
    %cst_72 = arith.constant dense<0.000000e+00> : vector<2x96xf32>
    %273 = tpu.matmul %272, %6, %cst_72 {dimension_numbers = #tpu.dot_dimension_numbers<[1], [0], [0], [1], [0, 0, 1, 1], [], []>} : vector<2x32xf32>, vector<32x96xf32>, vector<2x96xf32> -> vector<2x96xf32>
    %274 = vector.extract_strided_slice %5 {offsets = [4, 0], sizes = [1, 96], strides = [1, 1]} : vector<16x96xf32> to vector<1x96xf32>
    %275 = vector.extract_strided_slice %273 {offsets = [0, 0], sizes = [1, 96], strides = [1, 1]} : vector<2x96xf32> to vector<1x96xf32>
    %276 = vector.extract_strided_slice %272 {offsets = [0, 0], sizes = [1, 32], strides = [1, 1]} : vector<2x32xf32> to vector<1x32xf32>
    %277 = vector.extract_strided_slice %274 {offsets = [0, 0], sizes = [1, 32], strides = [1, 1]} : vector<1x96xf32> to vector<1x32xf32>
    %278 = vector.extract_strided_slice %275 {offsets = [0, 0], sizes = [1, 32], strides = [1, 1]} : vector<1x96xf32> to vector<1x32xf32>
    %279 = arith.addf %277, %278 : vector<1x32xf32>
    %280 = arith.negf %279 : vector<1x32xf32>
    %281 = math.exp %280 : vector<1x32xf32>
    %cst_73 = arith.constant 1.000000e+00 : f32
    %282 = vector.broadcast %cst_73 : f32 to vector<1x32xf32>
    %283 = arith.addf %282, %281 : vector<1x32xf32>
    %284 = arith.divf %282, %283 : vector<1x32xf32>
    %285 = vector.extract_strided_slice %274 {offsets = [0, 32], sizes = [1, 32], strides = [1, 1]} : vector<1x96xf32> to vector<1x32xf32>
    %286 = vector.extract_strided_slice %275 {offsets = [0, 32], sizes = [1, 32], strides = [1, 1]} : vector<1x96xf32> to vector<1x32xf32>
    %287 = arith.addf %285, %286 : vector<1x32xf32>
    %288 = arith.negf %287 : vector<1x32xf32>
    %289 = math.exp %288 : vector<1x32xf32>
    %cst_74 = arith.constant 1.000000e+00 : f32
    %290 = vector.broadcast %cst_74 : f32 to vector<1x32xf32>
    %291 = arith.addf %290, %289 : vector<1x32xf32>
    %292 = arith.divf %290, %291 : vector<1x32xf32>
    %293 = vector.extract_strided_slice %274 {offsets = [0, 64], sizes = [1, 32], strides = [1, 1]} : vector<1x96xf32> to vector<1x32xf32>
    %294 = vector.extract_strided_slice %275 {offsets = [0, 64], sizes = [1, 32], strides = [1, 1]} : vector<1x96xf32> to vector<1x32xf32>
    %295 = arith.addf %294, %7 : vector<1x32xf32>
    %296 = arith.mulf %284, %295 : vector<1x32xf32>
    %297 = arith.addf %293, %296 : vector<1x32xf32>
    %298 = math.tanh %297 : vector<1x32xf32>
    %cst_75 = arith.constant 1.000000e+00 : f32
    %299 = vector.broadcast %cst_75 : f32 to vector<1x32xf32>
    %300 = arith.subf %299, %292 : vector<1x32xf32>
    %301 = arith.mulf %300, %298 : vector<1x32xf32>
    %302 = arith.mulf %292, %276 : vector<1x32xf32>
    %303 = arith.addf %301, %302 : vector<1x32xf32>
    %c0_76 = arith.constant 0 : index
    %c0_77 = arith.constant 0 : index
    %304 = vector.load %arg11[%c0_76, %c0_77] : memref<2x32xf32, #tpu.memory_space<vmem>>, vector<1x32xf32>
    tpu.vector_store %arg11[%c0_76, %c0_77], %303 {strides = array<i32>} : memref<2x32xf32, #tpu.memory_space<vmem>>, vector<1x32xf32>,
    %c4 = arith.constant 4 : index
    %c0_78 = arith.constant 0 : index
    %305 = vector.load %arg12[%c4, %c0_78] : memref<16x32xf32, #tpu.memory_space<vmem>>, vector<1x32xf32>
    tpu.vector_store %arg12[%c4, %c0_78], %303 {strides = array<i32>} : memref<16x32xf32, #tpu.memory_space<vmem>>, vector<1x32xf32>,
    %306 = vector.extract_strided_slice %5 {offsets = [12, 0], sizes = [1, 96], strides = [1, 1]} : vector<16x96xf32> to vector<1x96xf32>
    %307 = vector.extract_strided_slice %273 {offsets = [1, 0], sizes = [1, 96], strides = [1, 1]} : vector<2x96xf32> to vector<1x96xf32>
    %308 = vector.extract_strided_slice %272 {offsets = [1, 0], sizes = [1, 32], strides = [1, 1]} : vector<2x32xf32> to vector<1x32xf32>
    %309 = vector.extract_strided_slice %306 {offsets = [0, 0], sizes = [1, 32], strides = [1, 1]} : vector<1x96xf32> to vector<1x32xf32>
    %310 = vector.extract_strided_slice %307 {offsets = [0, 0], sizes = [1, 32], strides = [1, 1]} : vector<1x96xf32> to vector<1x32xf32>
    %311 = arith.addf %309, %310 : vector<1x32xf32>
    %312 = arith.negf %311 : vector<1x32xf32>
    %313 = math.exp %312 : vector<1x32xf32>
    %cst_79 = arith.constant 1.000000e+00 : f32
    %314 = vector.broadcast %cst_79 : f32 to vector<1x32xf32>
    %315 = arith.addf %314, %313 : vector<1x32xf32>
    %316 = arith.divf %314, %315 : vector<1x32xf32>
    %317 = vector.extract_strided_slice %306 {offsets = [0, 32], sizes = [1, 32], strides = [1, 1]} : vector<1x96xf32> to vector<1x32xf32>
    %318 = vector.extract_strided_slice %307 {offsets = [0, 32], sizes = [1, 32], strides = [1, 1]} : vector<1x96xf32> to vector<1x32xf32>
    %319 = arith.addf %317, %318 : vector<1x32xf32>
    %320 = arith.negf %319 : vector<1x32xf32>
    %321 = math.exp %320 : vector<1x32xf32>
    %cst_80 = arith.constant 1.000000e+00 : f32
    %322 = vector.broadcast %cst_80 : f32 to vector<1x32xf32>
    %323 = arith.addf %322, %321 : vector<1x32xf32>
    %324 = arith.divf %322, %323 : vector<1x32xf32>
    %325 = vector.extract_strided_slice %306 {offsets = [0, 64], sizes = [1, 32], strides = [1, 1]} : vector<1x96xf32> to vector<1x32xf32>
    %326 = vector.extract_strided_slice %307 {offsets = [0, 64], sizes = [1, 32], strides = [1, 1]} : vector<1x96xf32> to vector<1x32xf32>
    %327 = arith.addf %326, %7 : vector<1x32xf32>
    %328 = arith.mulf %316, %327 : vector<1x32xf32>
    %329 = arith.addf %325, %328 : vector<1x32xf32>
    %330 = math.tanh %329 : vector<1x32xf32>
    %cst_81 = arith.constant 1.000000e+00 : f32
    %331 = vector.broadcast %cst_81 : f32 to vector<1x32xf32>
    %332 = arith.subf %331, %324 : vector<1x32xf32>
    %333 = arith.mulf %332, %330 : vector<1x32xf32>
    %334 = arith.mulf %324, %308 : vector<1x32xf32>
    %335 = arith.addf %333, %334 : vector<1x32xf32>
    %c1_82 = arith.constant 1 : index
    %c0_83 = arith.constant 0 : index
    %336 = vector.load %arg11[%c1_82, %c0_83] : memref<2x32xf32, #tpu.memory_space<vmem>>, vector<1x32xf32>
    tpu.vector_store %arg11[%c1_82, %c0_83], %335 {strides = array<i32>} : memref<2x32xf32, #tpu.memory_space<vmem>>, vector<1x32xf32>,
    %c12 = arith.constant 12 : index
    %c0_84 = arith.constant 0 : index
    %337 = vector.load %arg12[%c12, %c0_84] : memref<16x32xf32, #tpu.memory_space<vmem>>, vector<1x32xf32>
    tpu.vector_store %arg12[%c12, %c0_84], %335 {strides = array<i32>} : memref<16x32xf32, #tpu.memory_space<vmem>>, vector<1x32xf32>,
    %c0_85 = arith.constant 0 : index
    %c0_86 = arith.constant 0 : index
    %338 = vector.load %arg11[%c0_85, %c0_86] : memref<2x32xf32, #tpu.memory_space<vmem>>, vector<2x32xf32>
    %cst_87 = arith.constant dense<0.000000e+00> : vector<2x96xf32>
    %339 = tpu.matmul %338, %6, %cst_87 {dimension_numbers = #tpu.dot_dimension_numbers<[1], [0], [0], [1], [0, 0, 1, 1], [], []>} : vector<2x32xf32>, vector<32x96xf32>, vector<2x96xf32> -> vector<2x96xf32>
    %340 = vector.extract_strided_slice %5 {offsets = [5, 0], sizes = [1, 96], strides = [1, 1]} : vector<16x96xf32> to vector<1x96xf32>
    %341 = vector.extract_strided_slice %339 {offsets = [0, 0], sizes = [1, 96], strides = [1, 1]} : vector<2x96xf32> to vector<1x96xf32>
    %342 = vector.extract_strided_slice %338 {offsets = [0, 0], sizes = [1, 32], strides = [1, 1]} : vector<2x32xf32> to vector<1x32xf32>
    %343 = vector.extract_strided_slice %340 {offsets = [0, 0], sizes = [1, 32], strides = [1, 1]} : vector<1x96xf32> to vector<1x32xf32>
    %344 = vector.extract_strided_slice %341 {offsets = [0, 0], sizes = [1, 32], strides = [1, 1]} : vector<1x96xf32> to vector<1x32xf32>
    %345 = arith.addf %343, %344 : vector<1x32xf32>
    %346 = arith.negf %345 : vector<1x32xf32>
    %347 = math.exp %346 : vector<1x32xf32>
    %cst_88 = arith.constant 1.000000e+00 : f32
    %348 = vector.broadcast %cst_88 : f32 to vector<1x32xf32>
    %349 = arith.addf %348, %347 : vector<1x32xf32>
    %350 = arith.divf %348, %349 : vector<1x32xf32>
    %351 = vector.extract_strided_slice %340 {offsets = [0, 32], sizes = [1, 32], strides = [1, 1]} : vector<1x96xf32> to vector<1x32xf32>
    %352 = vector.extract_strided_slice %341 {offsets = [0, 32], sizes = [1, 32], strides = [1, 1]} : vector<1x96xf32> to vector<1x32xf32>
    %353 = arith.addf %351, %352 : vector<1x32xf32>
    %354 = arith.negf %353 : vector<1x32xf32>
    %355 = math.exp %354 : vector<1x32xf32>
    %cst_89 = arith.constant 1.000000e+00 : f32
    %356 = vector.broadcast %cst_89 : f32 to vector<1x32xf32>
    %357 = arith.addf %356, %355 : vector<1x32xf32>
    %358 = arith.divf %356, %357 : vector<1x32xf32>
    %359 = vector.extract_strided_slice %340 {offsets = [0, 64], sizes = [1, 32], strides = [1, 1]} : vector<1x96xf32> to vector<1x32xf32>
    %360 = vector.extract_strided_slice %341 {offsets = [0, 64], sizes = [1, 32], strides = [1, 1]} : vector<1x96xf32> to vector<1x32xf32>
    %361 = arith.addf %360, %7 : vector<1x32xf32>
    %362 = arith.mulf %350, %361 : vector<1x32xf32>
    %363 = arith.addf %359, %362 : vector<1x32xf32>
    %364 = math.tanh %363 : vector<1x32xf32>
    %cst_90 = arith.constant 1.000000e+00 : f32
    %365 = vector.broadcast %cst_90 : f32 to vector<1x32xf32>
    %366 = arith.subf %365, %358 : vector<1x32xf32>
    %367 = arith.mulf %366, %364 : vector<1x32xf32>
    %368 = arith.mulf %358, %342 : vector<1x32xf32>
    %369 = arith.addf %367, %368 : vector<1x32xf32>
    %c0_91 = arith.constant 0 : index
    %c0_92 = arith.constant 0 : index
    %370 = vector.load %arg11[%c0_91, %c0_92] : memref<2x32xf32, #tpu.memory_space<vmem>>, vector<1x32xf32>
    tpu.vector_store %arg11[%c0_91, %c0_92], %369 {strides = array<i32>} : memref<2x32xf32, #tpu.memory_space<vmem>>, vector<1x32xf32>,
    %c5 = arith.constant 5 : index
    %c0_93 = arith.constant 0 : index
    %371 = vector.load %arg12[%c5, %c0_93] : memref<16x32xf32, #tpu.memory_space<vmem>>, vector<1x32xf32>
    tpu.vector_store %arg12[%c5, %c0_93], %369 {strides = array<i32>} : memref<16x32xf32, #tpu.memory_space<vmem>>, vector<1x32xf32>,
    %372 = vector.extract_strided_slice %5 {offsets = [13, 0], sizes = [1, 96], strides = [1, 1]} : vector<16x96xf32> to vector<1x96xf32>
    %373 = vector.extract_strided_slice %339 {offsets = [1, 0], sizes = [1, 96], strides = [1, 1]} : vector<2x96xf32> to vector<1x96xf32>
    %374 = vector.extract_strided_slice %338 {offsets = [1, 0], sizes = [1, 32], strides = [1, 1]} : vector<2x32xf32> to vector<1x32xf32>
    %375 = vector.extract_strided_slice %372 {offsets = [0, 0], sizes = [1, 32], strides = [1, 1]} : vector<1x96xf32> to vector<1x32xf32>
    %376 = vector.extract_strided_slice %373 {offsets = [0, 0], sizes = [1, 32], strides = [1, 1]} : vector<1x96xf32> to vector<1x32xf32>
    %377 = arith.addf %375, %376 : vector<1x32xf32>
    %378 = arith.negf %377 : vector<1x32xf32>
    %379 = math.exp %378 : vector<1x32xf32>
    %cst_94 = arith.constant 1.000000e+00 : f32
    %380 = vector.broadcast %cst_94 : f32 to vector<1x32xf32>
    %381 = arith.addf %380, %379 : vector<1x32xf32>
    %382 = arith.divf %380, %381 : vector<1x32xf32>
    %383 = vector.extract_strided_slice %372 {offsets = [0, 32], sizes = [1, 32], strides = [1, 1]} : vector<1x96xf32> to vector<1x32xf32>
    %384 = vector.extract_strided_slice %373 {offsets = [0, 32], sizes = [1, 32], strides = [1, 1]} : vector<1x96xf32> to vector<1x32xf32>
    %385 = arith.addf %383, %384 : vector<1x32xf32>
    %386 = arith.negf %385 : vector<1x32xf32>
    %387 = math.exp %386 : vector<1x32xf32>
    %cst_95 = arith.constant 1.000000e+00 : f32
    %388 = vector.broadcast %cst_95 : f32 to vector<1x32xf32>
    %389 = arith.addf %388, %387 : vector<1x32xf32>
    %390 = arith.divf %388, %389 : vector<1x32xf32>
    %391 = vector.extract_strided_slice %372 {offsets = [0, 64], sizes = [1, 32], strides = [1, 1]} : vector<1x96xf32> to vector<1x32xf32>
    %392 = vector.extract_strided_slice %373 {offsets = [0, 64], sizes = [1, 32], strides = [1, 1]} : vector<1x96xf32> to vector<1x32xf32>
    %393 = arith.addf %392, %7 : vector<1x32xf32>
    %394 = arith.mulf %382, %393 : vector<1x32xf32>
    %395 = arith.addf %391, %394 : vector<1x32xf32>
    %396 = math.tanh %395 : vector<1x32xf32>
    %cst_96 = arith.constant 1.000000e+00 : f32
    %397 = vector.broadcast %cst_96 : f32 to vector<1x32xf32>
    %398 = arith.subf %397, %390 : vector<1x32xf32>
    %399 = arith.mulf %398, %396 : vector<1x32xf32>
    %400 = arith.mulf %390, %374 : vector<1x32xf32>
    %401 = arith.addf %399, %400 : vector<1x32xf32>
    %c1_97 = arith.constant 1 : index
    %c0_98 = arith.constant 0 : index
    %402 = vector.load %arg11[%c1_97, %c0_98] : memref<2x32xf32, #tpu.memory_space<vmem>>, vector<1x32xf32>
    tpu.vector_store %arg11[%c1_97, %c0_98], %401 {strides = array<i32>} : memref<2x32xf32, #tpu.memory_space<vmem>>, vector<1x32xf32>,
    %c13 = arith.constant 13 : index
    %c0_99 = arith.constant 0 : index
    %403 = vector.load %arg12[%c13, %c0_99] : memref<16x32xf32, #tpu.memory_space<vmem>>, vector<1x32xf32>
    tpu.vector_store %arg12[%c13, %c0_99], %401 {strides = array<i32>} : memref<16x32xf32, #tpu.memory_space<vmem>>, vector<1x32xf32>,
    %c0_100 = arith.constant 0 : index
    %c0_101 = arith.constant 0 : index
    %404 = vector.load %arg11[%c0_100, %c0_101] : memref<2x32xf32, #tpu.memory_space<vmem>>, vector<2x32xf32>
    %cst_102 = arith.constant dense<0.000000e+00> : vector<2x96xf32>
    %405 = tpu.matmul %404, %6, %cst_102 {dimension_numbers = #tpu.dot_dimension_numbers<[1], [0], [0], [1], [0, 0, 1, 1], [], []>} : vector<2x32xf32>, vector<32x96xf32>, vector<2x96xf32> -> vector<2x96xf32>
    %406 = vector.extract_strided_slice %5 {offsets = [6, 0], sizes = [1, 96], strides = [1, 1]} : vector<16x96xf32> to vector<1x96xf32>
    %407 = vector.extract_strided_slice %405 {offsets = [0, 0], sizes = [1, 96], strides = [1, 1]} : vector<2x96xf32> to vector<1x96xf32>
    %408 = vector.extract_strided_slice %404 {offsets = [0, 0], sizes = [1, 32], strides = [1, 1]} : vector<2x32xf32> to vector<1x32xf32>
    %409 = vector.extract_strided_slice %406 {offsets = [0, 0], sizes = [1, 32], strides = [1, 1]} : vector<1x96xf32> to vector<1x32xf32>
    %410 = vector.extract_strided_slice %407 {offsets = [0, 0], sizes = [1, 32], strides = [1, 1]} : vector<1x96xf32> to vector<1x32xf32>
    %411 = arith.addf %409, %410 : vector<1x32xf32>
    %412 = arith.negf %411 : vector<1x32xf32>
    %413 = math.exp %412 : vector<1x32xf32>
    %cst_103 = arith.constant 1.000000e+00 : f32
    %414 = vector.broadcast %cst_103 : f32 to vector<1x32xf32>
    %415 = arith.addf %414, %413 : vector<1x32xf32>
    %416 = arith.divf %414, %415 : vector<1x32xf32>
    %417 = vector.extract_strided_slice %406 {offsets = [0, 32], sizes = [1, 32], strides = [1, 1]} : vector<1x96xf32> to vector<1x32xf32>
    %418 = vector.extract_strided_slice %407 {offsets = [0, 32], sizes = [1, 32], strides = [1, 1]} : vector<1x96xf32> to vector<1x32xf32>
    %419 = arith.addf %417, %418 : vector<1x32xf32>
    %420 = arith.negf %419 : vector<1x32xf32>
    %421 = math.exp %420 : vector<1x32xf32>
    %cst_104 = arith.constant 1.000000e+00 : f32
    %422 = vector.broadcast %cst_104 : f32 to vector<1x32xf32>
    %423 = arith.addf %422, %421 : vector<1x32xf32>
    %424 = arith.divf %422, %423 : vector<1x32xf32>
    %425 = vector.extract_strided_slice %406 {offsets = [0, 64], sizes = [1, 32], strides = [1, 1]} : vector<1x96xf32> to vector<1x32xf32>
    %426 = vector.extract_strided_slice %407 {offsets = [0, 64], sizes = [1, 32], strides = [1, 1]} : vector<1x96xf32> to vector<1x32xf32>
    %427 = arith.addf %426, %7 : vector<1x32xf32>
    %428 = arith.mulf %416, %427 : vector<1x32xf32>
    %429 = arith.addf %425, %428 : vector<1x32xf32>
    %430 = math.tanh %429 : vector<1x32xf32>
    %cst_105 = arith.constant 1.000000e+00 : f32
    %431 = vector.broadcast %cst_105 : f32 to vector<1x32xf32>
    %432 = arith.subf %431, %424 : vector<1x32xf32>
    %433 = arith.mulf %432, %430 : vector<1x32xf32>
    %434 = arith.mulf %424, %408 : vector<1x32xf32>
    %435 = arith.addf %433, %434 : vector<1x32xf32>
    %c0_106 = arith.constant 0 : index
    %c0_107 = arith.constant 0 : index
    %436 = vector.load %arg11[%c0_106, %c0_107] : memref<2x32xf32, #tpu.memory_space<vmem>>, vector<1x32xf32>
    tpu.vector_store %arg11[%c0_106, %c0_107], %435 {strides = array<i32>} : memref<2x32xf32, #tpu.memory_space<vmem>>, vector<1x32xf32>,
    %c6 = arith.constant 6 : index
    %c0_108 = arith.constant 0 : index
    %437 = vector.load %arg12[%c6, %c0_108] : memref<16x32xf32, #tpu.memory_space<vmem>>, vector<1x32xf32>
    tpu.vector_store %arg12[%c6, %c0_108], %435 {strides = array<i32>} : memref<16x32xf32, #tpu.memory_space<vmem>>, vector<1x32xf32>,
    %438 = vector.extract_strided_slice %5 {offsets = [14, 0], sizes = [1, 96], strides = [1, 1]} : vector<16x96xf32> to vector<1x96xf32>
    %439 = vector.extract_strided_slice %405 {offsets = [1, 0], sizes = [1, 96], strides = [1, 1]} : vector<2x96xf32> to vector<1x96xf32>
    %440 = vector.extract_strided_slice %404 {offsets = [1, 0], sizes = [1, 32], strides = [1, 1]} : vector<2x32xf32> to vector<1x32xf32>
    %441 = vector.extract_strided_slice %438 {offsets = [0, 0], sizes = [1, 32], strides = [1, 1]} : vector<1x96xf32> to vector<1x32xf32>
    %442 = vector.extract_strided_slice %439 {offsets = [0, 0], sizes = [1, 32], strides = [1, 1]} : vector<1x96xf32> to vector<1x32xf32>
    %443 = arith.addf %441, %442 : vector<1x32xf32>
    %444 = arith.negf %443 : vector<1x32xf32>
    %445 = math.exp %444 : vector<1x32xf32>
    %cst_109 = arith.constant 1.000000e+00 : f32
    %446 = vector.broadcast %cst_109 : f32 to vector<1x32xf32>
    %447 = arith.addf %446, %445 : vector<1x32xf32>
    %448 = arith.divf %446, %447 : vector<1x32xf32>
    %449 = vector.extract_strided_slice %438 {offsets = [0, 32], sizes = [1, 32], strides = [1, 1]} : vector<1x96xf32> to vector<1x32xf32>
    %450 = vector.extract_strided_slice %439 {offsets = [0, 32], sizes = [1, 32], strides = [1, 1]} : vector<1x96xf32> to vector<1x32xf32>
    %451 = arith.addf %449, %450 : vector<1x32xf32>
    %452 = arith.negf %451 : vector<1x32xf32>
    %453 = math.exp %452 : vector<1x32xf32>
    %cst_110 = arith.constant 1.000000e+00 : f32
    %454 = vector.broadcast %cst_110 : f32 to vector<1x32xf32>
    %455 = arith.addf %454, %453 : vector<1x32xf32>
    %456 = arith.divf %454, %455 : vector<1x32xf32>
    %457 = vector.extract_strided_slice %438 {offsets = [0, 64], sizes = [1, 32], strides = [1, 1]} : vector<1x96xf32> to vector<1x32xf32>
    %458 = vector.extract_strided_slice %439 {offsets = [0, 64], sizes = [1, 32], strides = [1, 1]} : vector<1x96xf32> to vector<1x32xf32>
    %459 = arith.addf %458, %7 : vector<1x32xf32>
    %460 = arith.mulf %448, %459 : vector<1x32xf32>
    %461 = arith.addf %457, %460 : vector<1x32xf32>
    %462 = math.tanh %461 : vector<1x32xf32>
    %cst_111 = arith.constant 1.000000e+00 : f32
    %463 = vector.broadcast %cst_111 : f32 to vector<1x32xf32>
    %464 = arith.subf %463, %456 : vector<1x32xf32>
    %465 = arith.mulf %464, %462 : vector<1x32xf32>
    %466 = arith.mulf %456, %440 : vector<1x32xf32>
    %467 = arith.addf %465, %466 : vector<1x32xf32>
    %c1_112 = arith.constant 1 : index
    %c0_113 = arith.constant 0 : index
    %468 = vector.load %arg11[%c1_112, %c0_113] : memref<2x32xf32, #tpu.memory_space<vmem>>, vector<1x32xf32>
    tpu.vector_store %arg11[%c1_112, %c0_113], %467 {strides = array<i32>} : memref<2x32xf32, #tpu.memory_space<vmem>>, vector<1x32xf32>,
    %c14 = arith.constant 14 : index
    %c0_114 = arith.constant 0 : index
    %469 = vector.load %arg12[%c14, %c0_114] : memref<16x32xf32, #tpu.memory_space<vmem>>, vector<1x32xf32>
    tpu.vector_store %arg12[%c14, %c0_114], %467 {strides = array<i32>} : memref<16x32xf32, #tpu.memory_space<vmem>>, vector<1x32xf32>,
    %c0_115 = arith.constant 0 : index
    %c0_116 = arith.constant 0 : index
    %470 = vector.load %arg11[%c0_115, %c0_116] : memref<2x32xf32, #tpu.memory_space<vmem>>, vector<2x32xf32>
    %cst_117 = arith.constant dense<0.000000e+00> : vector<2x96xf32>
    %471 = tpu.matmul %470, %6, %cst_117 {dimension_numbers = #tpu.dot_dimension_numbers<[1], [0], [0], [1], [0, 0, 1, 1], [], []>} : vector<2x32xf32>, vector<32x96xf32>, vector<2x96xf32> -> vector<2x96xf32>
    %472 = vector.extract_strided_slice %5 {offsets = [7, 0], sizes = [1, 96], strides = [1, 1]} : vector<16x96xf32> to vector<1x96xf32>
    %473 = vector.extract_strided_slice %471 {offsets = [0, 0], sizes = [1, 96], strides = [1, 1]} : vector<2x96xf32> to vector<1x96xf32>
    %474 = vector.extract_strided_slice %470 {offsets = [0, 0], sizes = [1, 32], strides = [1, 1]} : vector<2x32xf32> to vector<1x32xf32>
    %475 = vector.extract_strided_slice %472 {offsets = [0, 0], sizes = [1, 32], strides = [1, 1]} : vector<1x96xf32> to vector<1x32xf32>
    %476 = vector.extract_strided_slice %473 {offsets = [0, 0], sizes = [1, 32], strides = [1, 1]} : vector<1x96xf32> to vector<1x32xf32>
    %477 = arith.addf %475, %476 : vector<1x32xf32>
    %478 = arith.negf %477 : vector<1x32xf32>
    %479 = math.exp %478 : vector<1x32xf32>
    %cst_118 = arith.constant 1.000000e+00 : f32
    %480 = vector.broadcast %cst_118 : f32 to vector<1x32xf32>
    %481 = arith.addf %480, %479 : vector<1x32xf32>
    %482 = arith.divf %480, %481 : vector<1x32xf32>
    %483 = vector.extract_strided_slice %472 {offsets = [0, 32], sizes = [1, 32], strides = [1, 1]} : vector<1x96xf32> to vector<1x32xf32>
    %484 = vector.extract_strided_slice %473 {offsets = [0, 32], sizes = [1, 32], strides = [1, 1]} : vector<1x96xf32> to vector<1x32xf32>
    %485 = arith.addf %483, %484 : vector<1x32xf32>
    %486 = arith.negf %485 : vector<1x32xf32>
    %487 = math.exp %486 : vector<1x32xf32>
    %cst_119 = arith.constant 1.000000e+00 : f32
    %488 = vector.broadcast %cst_119 : f32 to vector<1x32xf32>
    %489 = arith.addf %488, %487 : vector<1x32xf32>
    %490 = arith.divf %488, %489 : vector<1x32xf32>
    %491 = vector.extract_strided_slice %472 {offsets = [0, 64], sizes = [1, 32], strides = [1, 1]} : vector<1x96xf32> to vector<1x32xf32>
    %492 = vector.extract_strided_slice %473 {offsets = [0, 64], sizes = [1, 32], strides = [1, 1]} : vector<1x96xf32> to vector<1x32xf32>
    %493 = arith.addf %492, %7 : vector<1x32xf32>
    %494 = arith.mulf %482, %493 : vector<1x32xf32>
    %495 = arith.addf %491, %494 : vector<1x32xf32>
    %496 = math.tanh %495 : vector<1x32xf32>
    %cst_120 = arith.constant 1.000000e+00 : f32
    %497 = vector.broadcast %cst_120 : f32 to vector<1x32xf32>
    %498 = arith.subf %497, %490 : vector<1x32xf32>
    %499 = arith.mulf %498, %496 : vector<1x32xf32>
    %500 = arith.mulf %490, %474 : vector<1x32xf32>
    %501 = arith.addf %499, %500 : vector<1x32xf32>
    %c0_121 = arith.constant 0 : index
    %c0_122 = arith.constant 0 : index
    %502 = vector.load %arg11[%c0_121, %c0_122] : memref<2x32xf32, #tpu.memory_space<vmem>>, vector<1x32xf32>
    tpu.vector_store %arg11[%c0_121, %c0_122], %501 {strides = array<i32>} : memref<2x32xf32, #tpu.memory_space<vmem>>, vector<1x32xf32>,
    %c7 = arith.constant 7 : index
    %c0_123 = arith.constant 0 : index
    %503 = vector.load %arg12[%c7, %c0_123] : memref<16x32xf32, #tpu.memory_space<vmem>>, vector<1x32xf32>
    tpu.vector_store %arg12[%c7, %c0_123], %501 {strides = array<i32>} : memref<16x32xf32, #tpu.memory_space<vmem>>, vector<1x32xf32>,
    %504 = vector.extract_strided_slice %5 {offsets = [15, 0], sizes = [1, 96], strides = [1, 1]} : vector<16x96xf32> to vector<1x96xf32>
    %505 = vector.extract_strided_slice %471 {offsets = [1, 0], sizes = [1, 96], strides = [1, 1]} : vector<2x96xf32> to vector<1x96xf32>
    %506 = vector.extract_strided_slice %470 {offsets = [1, 0], sizes = [1, 32], strides = [1, 1]} : vector<2x32xf32> to vector<1x32xf32>
    %507 = vector.extract_strided_slice %504 {offsets = [0, 0], sizes = [1, 32], strides = [1, 1]} : vector<1x96xf32> to vector<1x32xf32>
    %508 = vector.extract_strided_slice %505 {offsets = [0, 0], sizes = [1, 32], strides = [1, 1]} : vector<1x96xf32> to vector<1x32xf32>
    %509 = arith.addf %507, %508 : vector<1x32xf32>
    %510 = arith.negf %509 : vector<1x32xf32>
    %511 = math.exp %510 : vector<1x32xf32>
    %cst_124 = arith.constant 1.000000e+00 : f32
    %512 = vector.broadcast %cst_124 : f32 to vector<1x32xf32>
    %513 = arith.addf %512, %511 : vector<1x32xf32>
    %514 = arith.divf %512, %513 : vector<1x32xf32>
    %515 = vector.extract_strided_slice %504 {offsets = [0, 32], sizes = [1, 32], strides = [1, 1]} : vector<1x96xf32> to vector<1x32xf32>
    %516 = vector.extract_strided_slice %505 {offsets = [0, 32], sizes = [1, 32], strides = [1, 1]} : vector<1x96xf32> to vector<1x32xf32>
    %517 = arith.addf %515, %516 : vector<1x32xf32>
    %518 = arith.negf %517 : vector<1x32xf32>
    %519 = math.exp %518 : vector<1x32xf32>
    %cst_125 = arith.constant 1.000000e+00 : f32
    %520 = vector.broadcast %cst_125 : f32 to vector<1x32xf32>
    %521 = arith.addf %520, %519 : vector<1x32xf32>
    %522 = arith.divf %520, %521 : vector<1x32xf32>
    %523 = vector.extract_strided_slice %504 {offsets = [0, 64], sizes = [1, 32], strides = [1, 1]} : vector<1x96xf32> to vector<1x32xf32>
    %524 = vector.extract_strided_slice %505 {offsets = [0, 64], sizes = [1, 32], strides = [1, 1]} : vector<1x96xf32> to vector<1x32xf32>
    %525 = arith.addf %524, %7 : vector<1x32xf32>
    %526 = arith.mulf %514, %525 : vector<1x32xf32>
    %527 = arith.addf %523, %526 : vector<1x32xf32>
    %528 = math.tanh %527 : vector<1x32xf32>
    %cst_126 = arith.constant 1.000000e+00 : f32
    %529 = vector.broadcast %cst_126 : f32 to vector<1x32xf32>
    %530 = arith.subf %529, %522 : vector<1x32xf32>
    %531 = arith.mulf %530, %528 : vector<1x32xf32>
    %532 = arith.mulf %522, %506 : vector<1x32xf32>
    %533 = arith.addf %531, %532 : vector<1x32xf32>
    %c1_127 = arith.constant 1 : index
    %c0_128 = arith.constant 0 : index
    %534 = vector.load %arg11[%c1_127, %c0_128] : memref<2x32xf32, #tpu.memory_space<vmem>>, vector<1x32xf32>
    tpu.vector_store %arg11[%c1_127, %c0_128], %533 {strides = array<i32>} : memref<2x32xf32, #tpu.memory_space<vmem>>, vector<1x32xf32>,
    %c15 = arith.constant 15 : index
    %c0_129 = arith.constant 0 : index
    %535 = vector.load %arg12[%c15, %c0_129] : memref<16x32xf32, #tpu.memory_space<vmem>>, vector<1x32xf32>
    tpu.vector_store %arg12[%c15, %c0_129], %533 {strides = array<i32>} : memref<16x32xf32, #tpu.memory_space<vmem>>, vector<1x32xf32>,
    %c0_130 = arith.constant 0 : index
    %c0_131 = arith.constant 0 : index
    %536 = vector.load %arg11[%c0_130, %c0_131] : memref<2x32xf32, #tpu.memory_space<vmem>>, vector<2x32xf32>
    %c0_132 = arith.constant 0 : index
    %c0_133 = arith.constant 0 : index
    %537 = vector.load %arg10[%c0_132, %c0_133] : memref<2x32xf32, #tpu.memory_space<vmem>>, vector<2x32xf32>
    tpu.vector_store %arg10[%c0_132, %c0_133], %536 {strides = array<i32>} : memref<2x32xf32, #tpu.memory_space<vmem>>, vector<2x32xf32>,
    %c0_134 = arith.constant 0 : index
    %c0_135 = arith.constant 0 : index
    %538 = vector.load %arg12[%c0_134, %c0_135] : memref<16x32xf32, #tpu.memory_space<vmem>>, vector<16x32xf32>
    %c0_136 = arith.constant 0 : index
    %c0_137 = arith.constant 0 : index
    %539 = vector.load %arg7[%c0_136, %c0_137] : memref<32x16xf32, #tpu.memory_space<vmem>>, vector<32x16xf32>
    %cst_138 = arith.constant dense<0.000000e+00> : vector<16x16xf32>
    %540 = tpu.matmul %538, %539, %cst_138 {dimension_numbers = #tpu.dot_dimension_numbers<[1], [0], [0], [1], [0, 0, 1, 1], [], []>} : vector<16x32xf32>, vector<32x16xf32>, vector<16x16xf32> -> vector<16x16xf32>
    %c0_139 = arith.constant 0 : index
    %c0_140 = arith.constant 0 : index
    %541 = vector.load %arg8[%c0_139, %c0_140] : memref<1x16xf32, #tpu.memory_space<vmem>>, vector<1x16xf32>
    %542 = vector.broadcast %541 : vector<1x16xf32> to vector<16x16xf32>
    %543 = arith.addf %540, %542 : vector<16x16xf32>
    %cst_141 = arith.constant dense<0xFF800000> : vector<16xf32>
    %544 = vector.multi_reduction <maximumf>, %543, %cst_141 [1] : vector<16x16xf32> to vector<16xf32>
    %545 = vector.shape_cast %544 : vector<16xf32> to vector<16x1xf32>
    %546 = vector.broadcast %545 : vector<16x1xf32> to vector<16x16xf32>
    %547 = arith.subf %543, %546 : vector<16x16xf32>
    %548 = math.exp %547 : vector<16x16xf32>
    %cst_142 = arith.constant dense<0.000000e+00> : vector<16xf32>
    %549 = vector.multi_reduction <add>, %548, %cst_142 [1] : vector<16x16xf32> to vector<16xf32>
    %550 = vector.shape_cast %549 : vector<16xf32> to vector<16x1xf32>
    %551 = math.log %550 : vector<16x1xf32>
    %552 = vector.broadcast %551 : vector<16x1xf32> to vector<16x16xf32>
    %553 = arith.subf %547, %552 : vector<16x16xf32>
    %c0_143 = arith.constant 0 : index
    %c0_144 = arith.constant 0 : index
    %554 = vector.load %arg9[%c0_143, %c0_144] : memref<16x16xf32, #tpu.memory_space<vmem>>, vector<16x16xf32>
    tpu.vector_store %arg9[%c0_143, %c0_144], %553 {strides = array<i32>} : memref<16x16xf32, #tpu.memory_space<vmem>>, vector<16x16xf32>,
    return
  }
  func.func @transform_0(%arg0: i32) -> (i32, i32) {
    %c0_i32 = arith.constant 0 : i32
    %c0_i32_0 = arith.constant 0 : i32
    %c0_i32_1 = arith.constant 0 : i32
    return %c0_i32, %c0_i32_0 : i32, i32
  }
  func.func @transform_1(%arg0: i32) -> (i32, i32) {
    %c0_i32 = arith.constant 0 : i32
    %c0_i32_0 = arith.constant 0 : i32
    %c0_i32_1 = arith.constant 0 : i32
    return %c0_i32, %c0_i32_0 : i32, i32
  }
  func.func @transform_2(%arg0: i32) -> (i32, i32) {
    %c0_i32 = arith.constant 0 : i32
    %c0_i32_0 = arith.constant 0 : i32
    %c0_i32_1 = arith.constant 0 : i32
    return %c0_i32, %c0_i32_0 : i32, i32
  }
  func.func @transform_3(%arg0: i32) -> (i32, i32) {
    %c0_i32 = arith.constant 0 : i32
    %c0_i32_0 = arith.constant 0 : i32
    %c0_i32_1 = arith.constant 0 : i32
    return %c0_i32, %c0_i32_0 : i32, i32
  }
  func.func @transform_4(%arg0: i32) -> (i32, i32) {
    %c0_i32 = arith.constant 0 : i32
    %c0_i32_0 = arith.constant 0 : i32
    %c0_i32_1 = arith.constant 0 : i32
    return %c0_i32, %c0_i32_0 : i32, i32
  }
  func.func @transform_5(%arg0: i32) -> (i32, i32) {
    %c0_i32 = arith.constant 0 : i32
    %c0_i32_0 = arith.constant 0 : i32
    %c0_i32_1 = arith.constant 0 : i32
    return %c0_i32, %c0_i32_0 : i32, i32
  }
  func.func @transform_6(%arg0: i32) -> (i32, i32) {
    %c0_i32 = arith.constant 0 : i32
    %c0_i32_0 = arith.constant 0 : i32
    %c0_i32_1 = arith.constant 0 : i32
    return %c0_i32, %c0_i32_0 : i32, i32
  }
  func.func @transform_7(%arg0: i32) -> (i32, i32) {
    %c0_i32 = arith.constant 0 : i32
    %c0_i32_0 = arith.constant 0 : i32
    %c0_i32_1 = arith.constant 0 : i32
    return %c0_i32, %c0_i32_0 : i32, i32
  }
  func.func @transform_8(%arg0: i32) -> (i32, i32) {
    %c0_i32 = arith.constant 0 : i32
    %c0_i32_0 = arith.constant 0 : i32
    %c0_i32_1 = arith.constant 0 : i32
    return %c0_i32, %c0_i32_0 : i32, i32
  }
  func.func @transform_9(%arg0: i32) -> (i32, i32) {
    %c0_i32 = arith.constant 0 : i32
    %c0_i32_0 = arith.constant 0 : i32
    %c0_i32_1 = arith.constant 0 : i32
    return %c0_i32, %c0_i32_0 : i32, i32
  }
}

</mosaic_0001>

<llo_original>
// kernel: tpu_custom_call.1
$region0: #{tpu_custom_call.1}
  #allocation0 [shape = 'u32[]', space=smem, size = 0x4, offset = 0x4, fixed_abs, tag = 'smem constant byte address 0x4 - core index']
  #allocation1 [shape = 'u32[72,128]{1,0:T(1,128)}', space=vmem, size = 0x9000, scoped, tag = 'internal scratch']
  #allocation2 [shape = 'f32[2,32]{1,0:T(2,128)}', space=vmem, size = 0x400, scoped, tag = 'scratch operand']
  #allocation3 [shape = 'f32[16,32]{1,0:T(8,128)}', space=vmem, size = 0x2000, scoped, tag = 'scratch operand']
  %s0 = inlined_call_operand.vmem [shape: f32[16,16], index: 0, kind: input, shape index: {}]
  %s1 = inlined_call_operand.vmem [shape: f32[2,32], index: 1, kind: input, shape index: {}]
  %s2 = inlined_call_operand.hbm [shape: f32[16,96], index: 2, kind: input, shape index: {}]
  %s3 = inlined_call_operand.vmem [shape: f32[32,96], index: 3, kind: input, shape index: {}]
  %s4 = inlined_call_operand.vmem [shape: f32[1,96], index: 4, kind: input, shape index: {}]
  %s5 = inlined_call_operand.vmem [shape: f32[1,32], index: 5, kind: input, shape index: {}]
  %s6 = inlined_call_operand.vmem [shape: f32[32,16], index: 6, kind: input, shape index: {}]
  %s7 = inlined_call_operand.vmem [shape: f32[1,16], index: 7, kind: input, shape index: {}]
  %s8 = inlined_call_operand.hbm [shape: f32[16,16], index: 8, kind: output, shape index: {0}]
  %s9 = inlined_call_operand.hbm [shape: f32[2,32], index: 9, kind: output, shape index: {1}]
  %10 = xla_tuple %s8, %s9
  %s11 = sld [smem:[#allocation0]]
  $region54: #{tpu_custom_call.1} parent=0
    _
  %s13 = ssub.s32 1, %s11
  %s14 = scalar_select 0, %s13, %s11
  $region1: #{tpu_custom_call.1} parent=0
    #allocation4 [shape = 'u8[8192]{0}', space=vmem, size = 0x2000, scoped, tag = 'input window, operand 2, single buffered']
    #allocation5 [shape = 's32[1]{0}', space=sflag, size = 0x4, scoped, tag = 'scoped memory for tpu_custom_call.1']
    #allocation6 [shape = 's32[1]{0}', space=sflag, size = 0x4, scoped, tag = 'scoped memory for tpu_custom_call.1']
    #allocation7 [shape = 'u8[8192]{0}', space=vmem, size = 0x2000, scoped, tag = 'output window, operand 0, single buffered']
    #allocation8 [shape = 'u8[1024]{0}', space=vmem, size = 0x400, scoped, tag = 'output window, operand 1, single buffered']
    #allocation9 [shape = 's32[1]{0}', space=sflag, size = 0x4, scoped, tag = 'scoped memory for tpu_custom_call.1']
    %15 = vsyncpa [#allocation5], 0
    %16 = vsyncpa [#allocation6], 0
    %17 = vsyncpa [#allocation9], 0
    // Predicated region
    $region2: #{tpu_custom_call.1} parent=1 // pred_check
      _
    $region3: #{tpu_custom_call.1} parent=1 // pred_check_branch
      %19 = sbr.rel (0) target = $region5
    $region4: #{tpu_custom_call.1} parent=1 // pred_region
      _
    $region5: #{tpu_custom_call.1} parent=1 // pred_fallthru
      _
    // Predicated region
    $region6: #{tpu_custom_call.1} parent=1 // pred_check
      _
    $region7: #{tpu_custom_call.1} parent=1 // pred_check_branch
      %21 = sbr.rel (0) target = $region9
    $region8: #{tpu_custom_call.1} parent=1 // pred_region
      _
    $region9: #{tpu_custom_call.1} parent=1 // pred_fallthru
      _
    // Predicated region
    $region10: #{tpu_custom_call.1} parent=1 // pred_check
      _
    $region11: #{tpu_custom_call.1} parent=1 // pred_check_branch
      %23 = sbr.rel (0) target = $region13
    $region12: #{tpu_custom_call.1} parent=1 // pred_region
      %25 = vsyncadd [#allocation5], 0
      %s26 = sshll.u32 %s2, 4
      %s27 = int_to_ptr.hbm [resolvable:$true] %s26
      %s28 = sshll.u32 [#allocation4], 4
      %s29 = int_to_ptr.vmem [resolvable:$true] %s28
      %34 = dma.hbm_to_vmem [thread:$0]  %s27, 256, %s29, [#allocation5], 128, 128, 8
    $region13: #{tpu_custom_call.1} parent=1 // pred_fallthru
      _
    // Predicated region
    $region14: #{tpu_custom_call.1} parent=1 // pred_check
      _
    $region15: #{tpu_custom_call.1} parent=1 // pred_check_branch
      %36 = sbr.rel (0) target = $region17
    $region16: #{tpu_custom_call.1} parent=1 // pred_region
      _
    $region17: #{tpu_custom_call.1} parent=1 // pred_fallthru
      _
    // Predicated region
    $region18: #{tpu_custom_call.1} parent=1 // pred_check
      _
    $region19: #{tpu_custom_call.1} parent=1 // pred_check_branch
      %38 = sbr.rel (0) target = $region21
    $region20: #{tpu_custom_call.1} parent=1 // pred_region
      _
    $region21: #{tpu_custom_call.1} parent=1 // pred_fallthru
      _
    // Predicated region
    $region22: #{tpu_custom_call.1} parent=1 // pred_check
      _
    $region23: #{tpu_custom_call.1} parent=1 // pred_check_branch
      %40 = sbr.rel (0) target = $region25
    $region24: #{tpu_custom_call.1} parent=1 // pred_region
      _
    $region25: #{tpu_custom_call.1} parent=1 // pred_fallthru
      _
    // Predicated region
    $region26: #{tpu_custom_call.1} parent=1 // pred_check
      _
    $region27: #{tpu_custom_call.1} parent=1 // pred_check_branch
      %42 = sbr.rel (0) target = $region29
    $region28: #{tpu_custom_call.1} parent=1 // pred_region
      _
    $region29: #{tpu_custom_call.1} parent=1 // pred_fallthru
      _
    // Predicated region
    $region30: #{tpu_custom_call.1} parent=1 // pred_check
      _
    $region31: #{tpu_custom_call.1} parent=1 // pred_check_branch
      %44 = sbr.rel (0) target = $region33
    $region32: #{tpu_custom_call.1} parent=1 // pred_region
      _
    $region33: #{tpu_custom_call.1} parent=1 // pred_fallthru
      _
    // Predicated region
    $region34: #{tpu_custom_call.1} parent=1 // pred_check
      _
    $region35: #{tpu_custom_call.1} parent=1 // pred_check_branch
      %46 = sbr.rel (0) target = $region37
    $region36: #{tpu_custom_call.1} parent=1 // pred_region
      %48 = dma.done [#allocation5], 256
    $region37: #{tpu_custom_call.1} parent=1 // pred_fallthru
      _
    %v49 = vld [vmem:[%s0] sm:$0xff]
    %v50 = vld [vmem:[%s0 + $0x8] sm:$0xff]
    %v51 = vld [vmem:[#allocation4] sm:$0xff]
    %v52 = vld [vmem:[#allocation4 + $0x8] sm:$0xff]
    %v53 = vld [vmem:[%s4] sm:$0x1]
    %v55 = vperm.slane %v53, 0
    %vm57 = vcmask 130048
    %v59 = vsel %vm57, %v49, 0
    %v62 = vsel %vm57, %v50, 0
    %64 = vmatpush.msra.mxu0 0.0
    %65 = vmatpush.msra.mxu0 0.0
    %66 = vmatpush.msra.mxu0 0.0
    %67 = vmatpush.msra.mxu0 0.0
    %68 = vmatpush.msra.mxu0 0.0
    %69 = vmatpush.msra.mxu0 0.0
    %70 = vmatpush.msra.mxu0 0.0
    %71 = vmatpush.msra.mxu0 0.0
    %72 = vmatpush.msra.mxu0 0.0
    %73 = vmatpush.msra.mxu0 0.0
    %74 = vmatpush.msra.mxu0 0.0
    %75 = vmatpush.msra.mxu0 0.0
    %76 = vmatpush.msra.mxu0 0.0
    %77 = vmatpush.msra.mxu0 0.0
    %78 = vmatpush.msra.mxu0 %v52
    %79 = vmatpush.msra.mxu0 %v51
    %80 = vmatmul.f32.gmra.mxu0 %v59
    %v81 = vpop.f32.mrf.mxu0
    %v82 = vadd.f32 %v55, %v81
    %83 = vmatmul.f32.gmra.mxu0 %v62
    %v84 = vpop.f32.mrf.mxu0
    %v85 = vadd.f32 %v55, %v84
    %86 = vdwg.mxu0
    %v87 = vld [vmem:[%s3] sm:$0xff]
    %v88 = vld [vmem:[%s3 + $0x8] sm:$0xff]
    %v89 = vld [vmem:[%s3 + $0x10] sm:$0xff]
    %v90 = vld [vmem:[%s3 + $0x18] sm:$0xff]
    %v91 = vld [vmem:[%s5] sm:$0x1]
    %v92 = vld [vmem:[%s1] sm:$0x3]
    %vm93 = vcmask 261120
    %v95 = vsel %vm93, %v92, 0
    %97 = vmatpush.msra.mxu0 0.0
    %98 = vmatpush.msra.mxu0 0.0
    %99 = vmatpush.msra.mxu0 0.0
    %100 = vmatpush.msra.mxu0 0.0
    %101 = vmatpush.msra.mxu0 0.0
    %102 = vmatpush.msra.mxu0 0.0
    %103 = vmatpush.msra.mxu0 0.0
    %104 = vmatpush.msra.mxu0 0.0
    %105 = vmatpush.msra.mxu0 0.0
    %106 = vmatpush.msra.mxu0 0.0
    %107 = vmatpush.msra.mxu0 0.0
    %108 = vmatpush.msra.mxu0 0.0
    %109 = vmatpush.msra.mxu0 %v90
    %110 = vmatpush.msra.mxu0 %v89
    %111 = vmatpush.msra.mxu0 %v88
    %112 = vmatpush.msra.mxu0 %v87
    %113 = vmatmul.f32.gmra.mxu0 %v95
    %v114 = vpop.f32.mrf.mxu0
    %v115 = vadd.f32 0.0, %v114
    %116 = vdwg.mxu0
    %v117 = vadd.f32 %v82, %v115
    %v118 = vxor.u32 %v117, 2147483648
    %v119 = vmul.f32 %v118, 1.442695
    %v120 = vpow.pop %v119
    %v121 = vadd.f32 %v120, 1.0
    %v122 = vrcp.pop %v121
    %v123 = vmul.f32 %v121, %v122
    %v124 = vsub.f32 1.0, %v123
    %v125 = vmul.f32 %v122, %v124
    %v126 = vadd.f32 %v122, %v125
    %vm127 = vweird.f32 %v121
    %vm128 = vweird.f32 %v122
    %vm129 = vmor %vm127, %vm128
    %v130 = vsel %vm129, %v122, %v126
    %v131 = vand.u32 2147483647, %v121
    %vm132 = vcmp.eq.f32.partialorder %v131, 8.507059e+37
    %v133 = vand.u32 %v121, 2147483648
    %v134 = vor.u32 1.1754944e-38, %v133
    %v135 = vsel %vm132, %v134, %v130
    %v136 = vmul.f32 1.0, %v135
    %v138 = vperm.slane %v91, 0
    %139 = vrot.lane.b32.xlu0 %v138, 64
    %v140 = vpop.permute.xlu0 %139
    %v142 = vadd.f32 %v115, %v140
    %144 = vrot.lane.b32.xlu0 %v142, 64
    %v145 = vpop.permute.xlu0 %144
    %v147 = vmul.f32 %v136, %v145
    %149 = vrot.lane.b32.xlu0 %v147, 64
    %v150 = vpop.permute.xlu0 %149
    %v152 = vadd.f32 %v82, %v150
    %v153 = vtanh.pop %v152
    %v154 = vsub.f32 1.0, %v136
    %156 = vrot.lane.b32.xlu0 %v153, 96
    %v157 = vpop.permute.xlu0 %156
    %v159 = vmul.f32 %v154, %v157
    %160 = vrot.lane.b32.xlu0 %v92, 32
    %v161 = vpop.permute.xlu0 %160
    %v163 = vmul.f32 %v136, %v161
    %v164 = vadd.f32 %v159, %v163
    %166 = vrot.lane.b32.xlu0 %v164, 96
    %v167 = vpop.permute.xlu0 %166
    %vm169 = vcmask 253952
    %170 = vst.msk [vmem:[#allocation2] sm:$0x1] %vm169, %v167
    %171 = vst.msk [vmem:[#allocation3] sm:$0x1] %vm169, %v167
    %v173 = vrot.slane %v115, 1
    %v175 = vadd.f32 %v85, %v173
    %v176 = vxor.u32 %v175, 2147483648
    %v177 = vmul.f32 %v176, 1.442695
    %v178 = vpow.pop %v177
    %v179 = vadd.f32 %v178, 1.0
    %v180 = vrcp.pop %v179
    %v181 = vmul.f32 %v179, %v180
    %v182 = vsub.f32 1.0, %v181
    %v183 = vmul.f32 %v180, %v182
    %v184 = vadd.f32 %v180, %v183
    %vm185 = vweird.f32 %v179
    %vm186 = vweird.f32 %v180
    %vm187 = vmor %vm185, %vm186
    %v188 = vsel %vm187, %v180, %v184
    %v189 = vand.u32 2147483647, %v179
    %vm190 = vcmp.eq.f32.partialorder %v189, 8.507059e+37
    %v191 = vand.u32 %v179, 2147483648
    %v192 = vor.u32 1.1754944e-38, %v191
    %v193 = vsel %vm190, %v192, %v188
    %v194 = vmul.f32 1.0, %v193
    %v195 = vrot.slane %v142, 1
    %196 = vrot.lane.b32.xlu0 %v195, 64
    %v197 = vpop.permute.xlu0 %196
    %v199 = vmul.f32 %v194, %v197
    %201 = vrot.lane.b32.xlu0 %v199, 64
    %v202 = vpop.permute.xlu0 %201
    %v204 = vadd.f32 %v85, %v202
    %v205 = vtanh.pop %v204
    %v206 = vsub.f32 1.0, %v194
    %208 = vrot.lane.b32.xlu0 %v205, 96
    %v209 = vpop.permute.xlu0 %208
    %v211 = vmul.f32 %v206, %v209
    %v212 = vrot.slane %v92, 1
    %213 = vrot.lane.b32.xlu0 %v212, 32
    %v214 = vpop.permute.xlu0 %213
    %v216 = vmul.f32 %v194, %v214
    %v217 = vadd.f32 %v211, %v216
    %219 = vrot.lane.b32.xlu0 %v217, 96
    %v220 = vpop.permute.xlu0 %219
    %222 = vst.msk [vmem:[#allocation2 + $0x1] sm:$0x1] %vm169, %v220
    %223 = vst.msk [vmem:[#allocation3 + $0x8] sm:$0x1] %vm169, %v220
    %v224 = vld [vmem:[#allocation2] sm:$0x3]
    %v226 = vsel %vm93, %v224, 0
    %228 = vmatpush.msra.mxu0 0.0
    %229 = vmatpush.msra.mxu0 0.0
    %230 = vmatpush.msra.mxu0 0.0
    %231 = vmatpush.msra.mxu0 0.0
    %232 = vmatpush.msra.mxu0 0.0
    %233 = vmatpush.msra.mxu0 0.0
    %234 = vmatpush.msra.mxu0 0.0
    %235 = vmatpush.msra.mxu0 0.0
    %236 = vmatpush.msra.mxu0 0.0
    %237 = vmatpush.msra.mxu0 0.0
    %238 = vmatpush.msra.mxu0 0.0
    %239 = vmatpush.msra.mxu0 0.0
    %240 = vmatpush.msra.mxu0 %v90
    %241 = vmatpush.msra.mxu0 %v89
    %242 = vmatpush.msra.mxu0 %v88
    %243 = vmatpush.msra.mxu0 %v87
    %244 = vmatmul.f32.gmra.mxu0 %v226
    %v245 = vpop.f32.mrf.mxu0
    %v246 = vadd.f32 0.0, %v245
    %247 = vdwg.mxu0
    %v249 = vrot.slane %v246, 7
    %v251 = vadd.f32 %v82, %v249
    %v252 = vxor.u32 %v251, 2147483648
    %v253 = vmul.f32 %v252, 1.442695
    %v254 = vpow.pop %v253
    %v255 = vadd.f32 %v254, 1.0
    %v256 = vrcp.pop %v255
    %v257 = vmul.f32 %v255, %v256
    %v258 = vsub.f32 1.0, %v257
    %v259 = vmul.f32 %v256, %v258
    %v260 = vadd.f32 %v256, %v259
    %vm261 = vweird.f32 %v255
    %vm262 = vweird.f32 %v256
    %vm263 = vmor %vm261, %vm262
    %v264 = vsel %vm263, %v256, %v260
    %v265 = vand.u32 2147483647, %v255
    %vm266 = vcmp.eq.f32.partialorder %v265, 8.507059e+37
    %v267 = vand.u32 %v255, 2147483648
    %v268 = vor.u32 1.1754944e-38, %v267
    %v269 = vsel %vm266, %v268, %v264
    %v270 = vmul.f32 1.0, %v269
    %v271 = vadd.f32 %v246, %v140
    %v273 = vrot.slane %v271, 7
    %274 = vrot.lane.b32.xlu0 %v273, 64
    %v275 = vpop.permute.xlu0 %274
    %v277 = vmul.f32 %v270, %v275
    %279 = vrot.lane.b32.xlu0 %v277, 64
    %v280 = vpop.permute.xlu0 %279
    %v282 = vadd.f32 %v82, %v280
    %v283 = vtanh.pop %v282
    %v284 = vsub.f32 1.0, %v270
    %286 = vrot.lane.b32.xlu0 %v283, 96
    %v287 = vpop.permute.xlu0 %286
    %v289 = vmul.f32 %v284, %v287
    %v290 = vrot.slane %v224, 7
    %291 = vrot.lane.b32.xlu0 %v290, 32
    %v292 = vpop.permute.xlu0 %291
    %v294 = vmul.f32 %v270, %v292
    %v295 = vadd.f32 %v289, %v294
    %297 = vrot.lane.b32.xlu0 %v295, 96
    %v298 = vpop.permute.xlu0 %297
    %vm300 = vcmask 254977
    %301 = vst.msk [vmem:[#allocation2 - $0x1] sm:$0x2] %vm300, %v298
    %302 = vst.msk [vmem:[#allocation3] sm:$0x2] %vm300, %v298
    %v303 = vadd.f32 %v85, %v246
    %v304 = vxor.u32 %v303, 2147483648
    %v305 = vmul.f32 %v304, 1.442695
    %v306 = vpow.pop %v305
    %v307 = vadd.f32 %v306, 1.0
    %v308 = vrcp.pop %v307
    %v309 = vmul.f32 %v307, %v308
    %v310 = vsub.f32 1.0, %v309
    %v311 = vmul.f32 %v308, %v310
    %v312 = vadd.f32 %v308, %v311
    %vm313 = vweird.f32 %v307
    %vm314 = vweird.f32 %v308
    %vm315 = vmor %vm313, %vm314
    %v316 = vsel %vm315, %v308, %v312
    %v317 = vand.u32 2147483647, %v307
    %vm318 = vcmp.eq.f32.partialorder %v317, 8.507059e+37
    %v319 = vand.u32 %v307, 2147483648
    %v320 = vor.u32 1.1754944e-38, %v319
    %v321 = vsel %vm318, %v320, %v316
    %v322 = vmul.f32 1.0, %v321
    %323 = vrot.lane.b32.xlu0 %v271, 64
    %v324 = vpop.permute.xlu0 %323
    %v326 = vmul.f32 %v322, %v324
    %328 = vrot.lane.b32.xlu0 %v326, 64
    %v329 = vpop.permute.xlu0 %328
    %v331 = vadd.f32 %v85, %v329
    %v332 = vtanh.pop %v331
    %v333 = vsub.f32 1.0, %v322
    %335 = vrot.lane.b32.xlu0 %v332, 96
    %v336 = vpop.permute.xlu0 %335
    %v338 = vmul.f32 %v333, %v336
    %339 = vrot.lane.b32.xlu0 %v224, 32
    %v340 = vpop.permute.xlu0 %339
    %v342 = vmul.f32 %v322, %v340
    %v343 = vadd.f32 %v338, %v342
    %345 = vrot.lane.b32.xlu0 %v343, 96
    %v346 = vpop.permute.xlu0 %345
    %348 = vst.msk [vmem:[#allocation2] sm:$0x2] %vm300, %v346
    %349 = vst.msk [vmem:[#allocation3 + $0x8] sm:$0x2] %vm300, %v346
    %v350 = vld [vmem:[#allocation2] sm:$0x3]
    %v352 = vsel %vm93, %v350, 0
    %354 = vmatpush.msra.mxu0 0.0
    %355 = vmatpush.msra.mxu0 0.0
    %356 = vmatpush.msra.mxu0 0.0
    %357 = vmatpush.msra.mxu0 0.0
    %358 = vmatpush.msra.mxu0 0.0
    %359 = vmatpush.msra.mxu0 0.0
    %360 = vmatpush.msra.mxu0 0.0
    %361 = vmatpush.msra.mxu0 0.0
    %362 = vmatpush.msra.mxu0 0.0
    %363 = vmatpush.msra.mxu0 0.0
    %364 = vmatpush.msra.mxu0 0.0
    %365 = vmatpush.msra.mxu0 0.0
    %366 = vmatpush.msra.mxu0 %v90
    %367 = vmatpush.msra.mxu0 %v89
    %368 = vmatpush.msra.mxu0 %v88
    %369 = vmatpush.msra.mxu0 %v87
    %370 = vmatmul.f32.gmra.mxu0 %v352
    %v371 = vpop.f32.mrf.mxu0
    %v372 = vadd.f32 0.0, %v371
    %373 = vdwg.mxu0
    %v375 = vrot.slane %v372, 6
    %v377 = vadd.f32 %v82, %v375
    %v378 = vxor.u32 %v377, 2147483648
    %v379 = vmul.f32 %v378, 1.442695
    %v380 = vpow.pop %v379
    %v381 = vadd.f32 %v380, 1.0
    %v382 = vrcp.pop %v381
    %v383 = vmul.f32 %v381, %v382
    %v384 = vsub.f32 1.0, %v383
    %v385 = vmul.f32 %v382, %v384
    %v386 = vadd.f32 %v382, %v385
    %vm387 = vweird.f32 %v381
    %vm388 = vweird.f32 %v382
    %vm389 = vmor %vm387, %vm388
    %v390 = vsel %vm389, %v382, %v386
    %v391 = vand.u32 2147483647, %v381
    %vm392 = vcmp.eq.f32.partialorder %v391, 8.507059e+37
    %v393 = vand.u32 %v381, 2147483648
    %v394 = vor.u32 1.1754944e-38, %v393
    %v395 = vsel %vm392, %v394, %v390
    %v396 = vmul.f32 1.0, %v395
    %v397 = vadd.f32 %v372, %v140
    %v399 = vrot.slane %v397, 6
    %400 = vrot.lane.b32.xlu0 %v399, 64
    %v401 = vpop.permute.xlu0 %400
    %v403 = vmul.f32 %v396, %v401
    %405 = vrot.lane.b32.xlu0 %v403, 64
    %v406 = vpop.permute.xlu0 %405
    %v408 = vadd.f32 %v82, %v406
    %v409 = vtanh.pop %v408
    %v410 = vsub.f32 1.0, %v396
    %412 = vrot.lane.b32.xlu0 %v409, 96
    %v413 = vpop.permute.xlu0 %412
    %v415 = vmul.f32 %v410, %v413
    %v416 = vrot.slane %v350, 6
    %417 = vrot.lane.b32.xlu0 %v416, 32
    %v418 = vpop.permute.xlu0 %417
    %v420 = vmul.f32 %v396, %v418
    %v421 = vadd.f32 %v415, %v420
    %423 = vrot.lane.b32.xlu0 %v421, 96
    %v424 = vpop.permute.xlu0 %423
    %vm426 = vcmask 256002
    %427 = vst.msk [vmem:[#allocation2 - $0x2] sm:$0x4] %vm426, %v424
    %428 = vst.msk [vmem:[#allocation3] sm:$0x4] %vm426, %v424
    %v429 = vrot.slane %v372, 7
    %v431 = vadd.f32 %v85, %v429
    %v432 = vxor.u32 %v431, 2147483648
    %v433 = vmul.f32 %v432, 1.442695
    %v434 = vpow.pop %v433
    %v435 = vadd.f32 %v434, 1.0
    %v436 = vrcp.pop %v435
    %v437 = vmul.f32 %v435, %v436
    %v438 = vsub.f32 1.0, %v437
    %v439 = vmul.f32 %v436, %v438
    %v440 = vadd.f32 %v436, %v439
    %vm441 = vweird.f32 %v435
    %vm442 = vweird.f32 %v436
    %vm443 = vmor %vm441, %vm442
    %v444 = vsel %vm443, %v436, %v440
    %v445 = vand.u32 2147483647, %v435
    %vm446 = vcmp.eq.f32.partialorder %v445, 8.507059e+37
    %v447 = vand.u32 %v435, 2147483648
    %v448 = vor.u32 1.1754944e-38, %v447
    %v449 = vsel %vm446, %v448, %v444
    %v450 = vmul.f32 1.0, %v449
    %v451 = vrot.slane %v397, 7
    %452 = vrot.lane.b32.xlu0 %v451, 64
    %v453 = vpop.permute.xlu0 %452
    %v455 = vmul.f32 %v450, %v453
    %457 = vrot.lane.b32.xlu0 %v455, 64
    %v458 = vpop.permute.xlu0 %457
    %v460 = vadd.f32 %v85, %v458
    %v461 = vtanh.pop %v460
    %v462 = vsub.f32 1.0, %v450
    %464 = vrot.lane.b32.xlu0 %v461, 96
    %v465 = vpop.permute.xlu0 %464
    %v467 = vmul.f32 %v462, %v465
    %v468 = vrot.slane %v350, 7
    %469 = vrot.lane.b32.xlu0 %v468, 32
    %v470 = vpop.permute.xlu0 %469
    %v472 = vmul.f32 %v450, %v470
    %v473 = vadd.f32 %v467, %v472
    %475 = vrot.lane.b32.xlu0 %v473, 96
    %v476 = vpop.permute.xlu0 %475
    %478 = vst.msk [vmem:[#allocation2 - $0x1] sm:$0x4] %vm426, %v476
    %479 = vst.msk [vmem:[#allocation3 + $0x8] sm:$0x4] %vm426, %v476
    %v480 = vld [vmem:[#allocation2] sm:$0x3]
    %v482 = vsel %vm93, %v480, 0
    %484 = vmatpush.msra.mxu0 0.0
    %485 = vmatpush.msra.mxu0 0.0
    %486 = vmatpush.msra.mxu0 0.0
    %487 = vmatpush.msra.mxu0 0.0
    %488 = vmatpush.msra.mxu0 0.0
    %489 = vmatpush.msra.mxu0 0.0
    %490 = vmatpush.msra.mxu0 0.0
    %491 = vmatpush.msra.mxu0 0.0
    %492 = vmatpush.msra.mxu0 0.0
    %493 = vmatpush.msra.mxu0 0.0
    %494 = vmatpush.msra.mxu0 0.0
    %495 = vmatpush.msra.mxu0 0.0
    %496 = vmatpush.msra.mxu0 %v90
    %497 = vmatpush.msra.mxu0 %v89
    %498 = vmatpush.msra.mxu0 %v88
    %499 = vmatpush.msra.mxu0 %v87
    %500 = vmatmul.f32.gmra.mxu0 %v482
    %v501 = vpop.f32.mrf.mxu0
    %v502 = vadd.f32 0.0, %v501
    %503 = vdwg.mxu0
    %v505 = vrot.slane %v502, 5
    %v507 = vadd.f32 %v82, %v505
    %v508 = vxor.u32 %v507, 2147483648
    %v509 = vmul.f32 %v508, 1.442695
    %v510 = vpow.pop %v509
    %v511 = vadd.f32 %v510, 1.0
    %v512 = vrcp.pop %v511
    %v513 = vmul.f32 %v511, %v512
    %v514 = vsub.f32 1.0, %v513
    %v515 = vmul.f32 %v512, %v514
    %v516 = vadd.f32 %v512, %v515
    %vm517 = vweird.f32 %v511
    %vm518 = vweird.f32 %v512
    %vm519 = vmor %vm517, %vm518
    %v520 = vsel %vm519, %v512, %v516
    %v521 = vand.u32 2147483647, %v511
    %vm522 = vcmp.eq.f32.partialorder %v521, 8.507059e+37
    %v523 = vand.u32 %v511, 2147483648
    %v524 = vor.u32 1.1754944e-38, %v523
    %v525 = vsel %vm522, %v524, %v520
    %v526 = vmul.f32 1.0, %v525
    %v527 = vadd.f32 %v502, %v140
    %v529 = vrot.slane %v527, 5
    %530 = vrot.lane.b32.xlu0 %v529, 64
    %v531 = vpop.permute.xlu0 %530
    %v533 = vmul.f32 %v526, %v531
    %535 = vrot.lane.b32.xlu0 %v533, 64
    %v536 = vpop.permute.xlu0 %535
    %v538 = vadd.f32 %v82, %v536
    %v539 = vtanh.pop %v538
    %v540 = vsub.f32 1.0, %v526
    %542 = vrot.lane.b32.xlu0 %v539, 96
    %v543 = vpop.permute.xlu0 %542
    %v545 = vmul.f32 %v540, %v543
    %v546 = vrot.slane %v480, 5
    %547 = vrot.lane.b32.xlu0 %v546, 32
    %v548 = vpop.permute.xlu0 %547
    %v550 = vmul.f32 %v526, %v548
    %v551 = vadd.f32 %v545, %v550
    %553 = vrot.lane.b32.xlu0 %v551, 96
    %v554 = vpop.permute.xlu0 %553
    %vm556 = vcmask 257027
    %557 = vst.msk [vmem:[#allocation2 - $0x3] sm:$0x8] %vm556, %v554
    %558 = vst.msk [vmem:[#allocation3] sm:$0x8] %vm556, %v554
    %v559 = vrot.slane %v502, 6
    %v561 = vadd.f32 %v85, %v559
    %v562 = vxor.u32 %v561, 2147483648
    %v563 = vmul.f32 %v562, 1.442695
    %v564 = vpow.pop %v563
    %v565 = vadd.f32 %v564, 1.0
    %v566 = vrcp.pop %v565
    %v567 = vmul.f32 %v565, %v566
    %v568 = vsub.f32 1.0, %v567
    %v569 = vmul.f32 %v566, %v568
    %v570 = vadd.f32 %v566, %v569
    %vm571 = vweird.f32 %v565
    %vm572 = vweird.f32 %v566
    %vm573 = vmor %vm571, %vm572
    %v574 = vsel %vm573, %v566, %v570
    %v575 = vand.u32 2147483647, %v565
    %vm576 = vcmp.eq.f32.partialorder %v575, 8.507059e+37
    %v577 = vand.u32 %v565, 2147483648
    %v578 = vor.u32 1.1754944e-38, %v577
    %v579 = vsel %vm576, %v578, %v574
    %v580 = vmul.f32 1.0, %v579
    %v581 = vrot.slane %v527, 6
    %582 = vrot.lane.b32.xlu0 %v581, 64
    %v583 = vpop.permute.xlu0 %582
    %v585 = vmul.f32 %v580, %v583
    %587 = vrot.lane.b32.xlu0 %v585, 64
    %v588 = vpop.permute.xlu0 %587
    %v590 = vadd.f32 %v85, %v588
    %v591 = vtanh.pop %v590
    %v592 = vsub.f32 1.0, %v580
    %594 = vrot.lane.b32.xlu0 %v591, 96
    %v595 = vpop.permute.xlu0 %594
    %v597 = vmul.f32 %v592, %v595
    %v598 = vrot.slane %v480, 6
    %599 = vrot.lane.b32.xlu0 %v598, 32
    %v600 = vpop.permute.xlu0 %599
    %v602 = vmul.f32 %v580, %v600
    %v603 = vadd.f32 %v597, %v602
    %605 = vrot.lane.b32.xlu0 %v603, 96
    %v606 = vpop.permute.xlu0 %605
    %608 = vst.msk [vmem:[#allocation2 - $0x2] sm:$0x8] %vm556, %v606
    %609 = vst.msk [vmem:[#allocation3 + $0x8] sm:$0x8] %vm556, %v606
    %v610 = vld [vmem:[#allocation2] sm:$0x3]
    %v612 = vsel %vm93, %v610, 0
    %614 = vmatpush.msra.mxu0 0.0
    %615 = vmatpush.msra.mxu0 0.0
    %616 = vmatpush.msra.mxu0 0.0
    %617 = vmatpush.msra.mxu0 0.0
    %618 = vmatpush.msra.mxu0 0.0
    %619 = vmatpush.msra.mxu0 0.0
    %620 = vmatpush.msra.mxu0 0.0
    %621 = vmatpush.msra.mxu0 0.0
    %622 = vmatpush.msra.mxu0 0.0
    %623 = vmatpush.msra.mxu0 0.0
    %624 = vmatpush.msra.mxu0 0.0
    %625 = vmatpush.msra.mxu0 0.0
    %626 = vmatpush.msra.mxu0 %v90
    %627 = vmatpush.msra.mxu0 %v89
    %628 = vmatpush.msra.mxu0 %v88
    %629 = vmatpush.msra.mxu0 %v87
    %630 = vmatmul.f32.gmra.mxu0 %v612
    %v631 = vpop.f32.mrf.mxu0
    %v632 = vadd.f32 0.0, %v631
    %633 = vdwg.mxu0
    %v635 = vrot.slane %v632, 4
    %v637 = vadd.f32 %v82, %v635
    %v638 = vxor.u32 %v637, 2147483648
    %v639 = vmul.f32 %v638, 1.442695
    %v640 = vpow.pop %v639
    %v641 = vadd.f32 %v640, 1.0
    %v642 = vrcp.pop %v641
    %v643 = vmul.f32 %v641, %v642
    %v644 = vsub.f32 1.0, %v643
    %v645 = vmul.f32 %v642, %v644
    %v646 = vadd.f32 %v642, %v645
    %vm647 = vweird.f32 %v641
    %vm648 = vweird.f32 %v642
    %vm649 = vmor %vm647, %vm648
    %v650 = vsel %vm649, %v642, %v646
    %v651 = vand.u32 2147483647, %v641
    %vm652 = vcmp.eq.f32.partialorder %v651, 8.507059e+37
    %v653 = vand.u32 %v641, 2147483648
    %v654 = vor.u32 1.1754944e-38, %v653
    %v655 = vsel %vm652, %v654, %v650
    %v656 = vmul.f32 1.0, %v655
    %v657 = vadd.f32 %v632, %v140
    %v659 = vrot.slane %v657, 4
    %660 = vrot.lane.b32.xlu0 %v659, 64
    %v661 = vpop.permute.xlu0 %660
    %v663 = vmul.f32 %v656, %v661
    %665 = vrot.lane.b32.xlu0 %v663, 64
    %v666 = vpop.permute.xlu0 %665
    %v668 = vadd.f32 %v82, %v666
    %v669 = vtanh.pop %v668
    %v670 = vsub.f32 1.0, %v656
    %672 = vrot.lane.b32.xlu0 %v669, 96
    %v673 = vpop.permute.xlu0 %672
    %v675 = vmul.f32 %v670, %v673
    %v676 = vrot.slane %v610, 4
    %677 = vrot.lane.b32.xlu0 %v676, 32
    %v678 = vpop.permute.xlu0 %677
    %v680 = vmul.f32 %v656, %v678
    %v681 = vadd.f32 %v675, %v680
    %683 = vrot.lane.b32.xlu0 %v681, 96
    %v684 = vpop.permute.xlu0 %683
    %vm686 = vcmask 258052
    %687 = vst.msk [vmem:[#allocation2 - $0x4] sm:$0x10] %vm686, %v684
    %688 = vst.msk [vmem:[#allocation3] sm:$0x10] %vm686, %v684
    %v689 = vrot.slane %v632, 5
    %v691 = vadd.f32 %v85, %v689
    %v692 = vxor.u32 %v691, 2147483648
    %v693 = vmul.f32 %v692, 1.442695
    %v694 = vpow.pop %v693
    %v695 = vadd.f32 %v694, 1.0
    %v696 = vrcp.pop %v695
    %v697 = vmul.f32 %v695, %v696
    %v698 = vsub.f32 1.0, %v697
    %v699 = vmul.f32 %v696, %v698
    %v700 = vadd.f32 %v696, %v699
    %vm701 = vweird.f32 %v695
    %vm702 = vweird.f32 %v696
    %vm703 = vmor %vm701, %vm702
    %v704 = vsel %vm703, %v696, %v700
    %v705 = vand.u32 2147483647, %v695
    %vm706 = vcmp.eq.f32.partialorder %v705, 8.507059e+37
    %v707 = vand.u32 %v695, 2147483648
    %v708 = vor.u32 1.1754944e-38, %v707
    %v709 = vsel %vm706, %v708, %v704
    %v710 = vmul.f32 1.0, %v709
    %v711 = vrot.slane %v657, 5
    %712 = vrot.lane.b32.xlu0 %v711, 64
    %v713 = vpop.permute.xlu0 %712
    %v715 = vmul.f32 %v710, %v713
    %717 = vrot.lane.b32.xlu0 %v715, 64
    %v718 = vpop.permute.xlu0 %717
    %v720 = vadd.f32 %v85, %v718
    %v721 = vtanh.pop %v720
    %v722 = vsub.f32 1.0, %v710
    %724 = vrot.lane.b32.xlu0 %v721, 96
    %v725 = vpop.permute.xlu0 %724
    %v727 = vmul.f32 %v722, %v725
    %v728 = vrot.slane %v610, 5
    %729 = vrot.lane.b32.xlu0 %v728, 32
    %v730 = vpop.permute.xlu0 %729
    %v732 = vmul.f32 %v710, %v730
    %v733 = vadd.f32 %v727, %v732
    %735 = vrot.lane.b32.xlu0 %v733, 96
    %v736 = vpop.permute.xlu0 %735
    %738 = vst.msk [vmem:[#allocation2 - $0x3] sm:$0x10] %vm686, %v736
    %739 = vst.msk [vmem:[#allocation3 + $0x8] sm:$0x10] %vm686, %v736
    %v740 = vld [vmem:[#allocation2] sm:$0x3]
    %v742 = vsel %vm93, %v740, 0
    %744 = vmatpush.msra.mxu0 0.0
    %745 = vmatpush.msra.mxu0 0.0
    %746 = vmatpush.msra.mxu0 0.0
    %747 = vmatpush.msra.mxu0 0.0
    %748 = vmatpush.msra.mxu0 0.0
    %749 = vmatpush.msra.mxu0 0.0
    %750 = vmatpush.msra.mxu0 0.0
    %751 = vmatpush.msra.mxu0 0.0
    %752 = vmatpush.msra.mxu0 0.0
    %753 = vmatpush.msra.mxu0 0.0
    %754 = vmatpush.msra.mxu0 0.0
    %755 = vmatpush.msra.mxu0 0.0
    %756 = vmatpush.msra.mxu0 %v90
    %757 = vmatpush.msra.mxu0 %v89
    %758 = vmatpush.msra.mxu0 %v88
    %759 = vmatpush.msra.mxu0 %v87
    %760 = vmatmul.f32.gmra.mxu0 %v742
    %v761 = vpop.f32.mrf.mxu0
    %v762 = vadd.f32 0.0, %v761
    %763 = vdwg.mxu0
    %v765 = vrot.slane %v762, 3
    %v767 = vadd.f32 %v82, %v765
    %v768 = vxor.u32 %v767, 2147483648
    %v769 = vmul.f32 %v768, 1.442695
    %v770 = vpow.pop %v769
    %v771 = vadd.f32 %v770, 1.0
    %v772 = vrcp.pop %v771
    %v773 = vmul.f32 %v771, %v772
    %v774 = vsub.f32 1.0, %v773
    %v775 = vmul.f32 %v772, %v774
    %v776 = vadd.f32 %v772, %v775
    %vm777 = vweird.f32 %v771
    %vm778 = vweird.f32 %v772
    %vm779 = vmor %vm777, %vm778
    %v780 = vsel %vm779, %v772, %v776
    %v781 = vand.u32 2147483647, %v771
    %vm782 = vcmp.eq.f32.partialorder %v781, 8.507059e+37
    %v783 = vand.u32 %v771, 2147483648
    %v784 = vor.u32 1.1754944e-38, %v783
    %v785 = vsel %vm782, %v784, %v780
    %v786 = vmul.f32 1.0, %v785
    %v787 = vadd.f32 %v762, %v140
    %v789 = vrot.slane %v787, 3
    %790 = vrot.lane.b32.xlu0 %v789, 64
    %v791 = vpop.permute.xlu0 %790
    %v793 = vmul.f32 %v786, %v791
    %795 = vrot.lane.b32.xlu0 %v793, 64
    %v796 = vpop.permute.xlu0 %795
    %v798 = vadd.f32 %v82, %v796
    %v799 = vtanh.pop %v798
    %v800 = vsub.f32 1.0, %v786
    %802 = vrot.lane.b32.xlu0 %v799, 96
    %v803 = vpop.permute.xlu0 %802
    %v805 = vmul.f32 %v800, %v803
    %v806 = vrot.slane %v740, 3
    %807 = vrot.lane.b32.xlu0 %v806, 32
    %v808 = vpop.permute.xlu0 %807
    %v810 = vmul.f32 %v786, %v808
    %v811 = vadd.f32 %v805, %v810
    %813 = vrot.lane.b32.xlu0 %v811, 96
    %v814 = vpop.permute.xlu0 %813
    %vm816 = vcmask 259077
    %817 = vst.msk [vmem:[#allocation2 - $0x5] sm:$0x20] %vm816, %v814
    %818 = vst.msk [vmem:[#allocation3] sm:$0x20] %vm816, %v814
    %v819 = vrot.slane %v762, 4
    %v821 = vadd.f32 %v85, %v819
    %v822 = vxor.u32 %v821, 2147483648
    %v823 = vmul.f32 %v822, 1.442695
    %v824 = vpow.pop %v823
    %v825 = vadd.f32 %v824, 1.0
    %v826 = vrcp.pop %v825
    %v827 = vmul.f32 %v825, %v826
    %v828 = vsub.f32 1.0, %v827
    %v829 = vmul.f32 %v826, %v828
    %v830 = vadd.f32 %v826, %v829
    %vm831 = vweird.f32 %v825
    %vm832 = vweird.f32 %v826
    %vm833 = vmor %vm831, %vm832
    %v834 = vsel %vm833, %v826, %v830
    %v835 = vand.u32 2147483647, %v825
    %vm836 = vcmp.eq.f32.partialorder %v835, 8.507059e+37
    %v837 = vand.u32 %v825, 2147483648
    %v838 = vor.u32 1.1754944e-38, %v837
    %v839 = vsel %vm836, %v838, %v834
    %v840 = vmul.f32 1.0, %v839
    %v841 = vrot.slane %v787, 4
    %842 = vrot.lane.b32.xlu0 %v841, 64
    %v843 = vpop.permute.xlu0 %842
    %v845 = vmul.f32 %v840, %v843
    %847 = vrot.lane.b32.xlu0 %v845, 64
    %v848 = vpop.permute.xlu0 %847
    %v850 = vadd.f32 %v85, %v848
    %v851 = vtanh.pop %v850
    %v852 = vsub.f32 1.0, %v840
    %854 = vrot.lane.b32.xlu0 %v851, 96
    %v855 = vpop.permute.xlu0 %854
    %v857 = vmul.f32 %v852, %v855
    %v858 = vrot.slane %v740, 4
    %859 = vrot.lane.b32.xlu0 %v858, 32
    %v860 = vpop.permute.xlu0 %859
    %v862 = vmul.f32 %v840, %v860
    %v863 = vadd.f32 %v857, %v862
    %865 = vrot.lane.b32.xlu0 %v863, 96
    %v866 = vpop.permute.xlu0 %865
    %868 = vst.msk [vmem:[#allocation2 - $0x4] sm:$0x20] %vm816, %v866
    %869 = vst.msk [vmem:[#allocation3 + $0x8] sm:$0x20] %vm816, %v866
    %v870 = vld [vmem:[#allocation2] sm:$0x3]
    %v872 = vsel %vm93, %v870, 0
    %874 = vmatpush.msra.mxu0 0.0
    %875 = vmatpush.msra.mxu0 0.0
    %876 = vmatpush.msra.mxu0 0.0
    %877 = vmatpush.msra.mxu0 0.0
    %878 = vmatpush.msra.mxu0 0.0
    %879 = vmatpush.msra.mxu0 0.0
    %880 = vmatpush.msra.mxu0 0.0
    %881 = vmatpush.msra.mxu0 0.0
    %882 = vmatpush.msra.mxu0 0.0
    %883 = vmatpush.msra.mxu0 0.0
    %884 = vmatpush.msra.mxu0 0.0
    %885 = vmatpush.msra.mxu0 0.0
    %886 = vmatpush.msra.mxu0 %v90
    %887 = vmatpush.msra.mxu0 %v89
    %888 = vmatpush.msra.mxu0 %v88
    %889 = vmatpush.msra.mxu0 %v87
    %890 = vmatmul.f32.gmra.mxu0 %v872
    %v891 = vpop.f32.mrf.mxu0
    %v892 = vadd.f32 0.0, %v891
    %893 = vdwg.mxu0
    %v895 = vrot.slane %v892, 2
    %v897 = vadd.f32 %v82, %v895
    %v898 = vxor.u32 %v897, 2147483648
    %v899 = vmul.f32 %v898, 1.442695
    %v900 = vpow.pop %v899
    %v901 = vadd.f32 %v900, 1.0
    %v902 = vrcp.pop %v901
    %v903 = vmul.f32 %v901, %v902
    %v904 = vsub.f32 1.0, %v903
    %v905 = vmul.f32 %v902, %v904
    %v906 = vadd.f32 %v902, %v905
    %vm907 = vweird.f32 %v901
    %vm908 = vweird.f32 %v902
    %vm909 = vmor %vm907, %vm908
    %v910 = vsel %vm909, %v902, %v906
    %v911 = vand.u32 2147483647, %v901
    %vm912 = vcmp.eq.f32.partialorder %v911, 8.507059e+37
    %v913 = vand.u32 %v901, 2147483648
    %v914 = vor.u32 1.1754944e-38, %v913
    %v915 = vsel %vm912, %v914, %v910
    %v916 = vmul.f32 1.0, %v915
    %v917 = vadd.f32 %v892, %v140
    %v919 = vrot.slane %v917, 2
    %920 = vrot.lane.b32.xlu0 %v919, 64
    %v921 = vpop.permute.xlu0 %920
    %v923 = vmul.f32 %v916, %v921
    %925 = vrot.lane.b32.xlu0 %v923, 64
    %v926 = vpop.permute.xlu0 %925
    %v928 = vadd.f32 %v82, %v926
    %v929 = vtanh.pop %v928
    %v930 = vsub.f32 1.0, %v916
    %932 = vrot.lane.b32.xlu0 %v929, 96
    %v933 = vpop.permute.xlu0 %932
    %v935 = vmul.f32 %v930, %v933
    %v936 = vrot.slane %v870, 2
    %937 = vrot.lane.b32.xlu0 %v936, 32
    %v938 = vpop.permute.xlu0 %937
    %v940 = vmul.f32 %v916, %v938
    %v941 = vadd.f32 %v935, %v940
    %943 = vrot.lane.b32.xlu0 %v941, 96
    %v944 = vpop.permute.xlu0 %943
    %vm946 = vcmask 260102
    %947 = vst.msk [vmem:[#allocation2 - $0x6] sm:$0x40] %vm946, %v944
    %948 = vst.msk [vmem:[#allocation3] sm:$0x40] %vm946, %v944
    %v949 = vrot.slane %v892, 3
    %v951 = vadd.f32 %v85, %v949
    %v952 = vxor.u32 %v951, 2147483648
    %v953 = vmul.f32 %v952, 1.442695
    %v954 = vpow.pop %v953
    %v955 = vadd.f32 %v954, 1.0
    %v956 = vrcp.pop %v955
    %v957 = vmul.f32 %v955, %v956
    %v958 = vsub.f32 1.0, %v957
    %v959 = vmul.f32 %v956, %v958
    %v960 = vadd.f32 %v956, %v959
    %vm961 = vweird.f32 %v955
    %vm962 = vweird.f32 %v956
    %vm963 = vmor %vm961, %vm962
    %v964 = vsel %vm963, %v956, %v960
    %v965 = vand.u32 2147483647, %v955
    %vm966 = vcmp.eq.f32.partialorder %v965, 8.507059e+37
    %v967 = vand.u32 %v955, 2147483648
    %v968 = vor.u32 1.1754944e-38, %v967
    %v969 = vsel %vm966, %v968, %v964
    %v970 = vmul.f32 1.0, %v969
    %v971 = vrot.slane %v917, 3
    %972 = vrot.lane.b32.xlu0 %v971, 64
    %v973 = vpop.permute.xlu0 %972
    %v975 = vmul.f32 %v970, %v973
    %977 = vrot.lane.b32.xlu0 %v975, 64
    %v978 = vpop.permute.xlu0 %977
    %v980 = vadd.f32 %v85, %v978
    %v981 = vtanh.pop %v980
    %v982 = vsub.f32 1.0, %v970
    %984 = vrot.lane.b32.xlu0 %v981, 96
    %v985 = vpop.permute.xlu0 %984
    %v987 = vmul.f32 %v982, %v985
    %v988 = vrot.slane %v870, 3
    %989 = vrot.lane.b32.xlu0 %v988, 32
    %v990 = vpop.permute.xlu0 %989
    %v992 = vmul.f32 %v970, %v990
    %v993 = vadd.f32 %v987, %v992
    %995 = vrot.lane.b32.xlu0 %v993, 96
    %v996 = vpop.permute.xlu0 %995
    %998 = vst.msk [vmem:[#allocation2 - $0x5] sm:$0x40] %vm946, %v996
    %999 = vst.msk [vmem:[#allocation3 + $0x8] sm:$0x40] %vm946, %v996
    %v1000 = vld [vmem:[#allocation2] sm:$0x3]
    %v1002 = vsel %vm93, %v1000, 0
    %1004 = vmatpush.msra.mxu0 0.0
    %1005 = vmatpush.msra.mxu0 0.0
    %1006 = vmatpush.msra.mxu0 0.0
    %1007 = vmatpush.msra.mxu0 0.0
    %1008 = vmatpush.msra.mxu0 0.0
    %1009 = vmatpush.msra.mxu0 0.0
    %1010 = vmatpush.msra.mxu0 0.0
    %1011 = vmatpush.msra.mxu0 0.0
    %1012 = vmatpush.msra.mxu0 0.0
    %1013 = vmatpush.msra.mxu0 0.0
    %1014 = vmatpush.msra.mxu0 0.0
    %1015 = vmatpush.msra.mxu0 0.0
    %1016 = vmatpush.msra.mxu0 %v90
    %1017 = vmatpush.msra.mxu0 %v89
    %1018 = vmatpush.msra.mxu0 %v88
    %1019 = vmatpush.msra.mxu0 %v87
    %1020 = vmatmul.f32.gmra.mxu0 %v1002
    %v1021 = vpop.f32.mrf.mxu0
    %v1022 = vadd.f32 0.0, %v1021
    %1023 = vdwg.mxu0
    %v1025 = vrot.slane %v1022, 1
    %v1027 = vadd.f32 %v82, %v1025
    %v1028 = vxor.u32 %v1027, 2147483648
    %v1029 = vmul.f32 %v1028, 1.442695
    %v1030 = vpow.pop %v1029
    %v1031 = vadd.f32 %v1030, 1.0
    %v1032 = vrcp.pop %v1031
    %v1033 = vmul.f32 %v1031, %v1032
    %v1034 = vsub.f32 1.0, %v1033
    %v1035 = vmul.f32 %v1032, %v1034
    %v1036 = vadd.f32 %v1032, %v1035
    %vm1037 = vweird.f32 %v1031
    %vm1038 = vweird.f32 %v1032
    %vm1039 = vmor %vm1037, %vm1038
    %v1040 = vsel %vm1039, %v1032, %v1036
    %v1041 = vand.u32 2147483647, %v1031
    %vm1042 = vcmp.eq.f32.partialorder %v1041, 8.507059e+37
    %v1043 = vand.u32 %v1031, 2147483648
    %v1044 = vor.u32 1.1754944e-38, %v1043
    %v1045 = vsel %vm1042, %v1044, %v1040
    %v1046 = vmul.f32 1.0, %v1045
    %v1047 = vadd.f32 %v1022, %v140
    %v1049 = vrot.slane %v1047, 1
    %1050 = vrot.lane.b32.xlu0 %v1049, 64
    %v1051 = vpop.permute.xlu0 %1050
    %v1053 = vmul.f32 %v1046, %v1051
    %1055 = vrot.lane.b32.xlu0 %v1053, 64
    %v1056 = vpop.permute.xlu0 %1055
    %v1058 = vadd.f32 %v82, %v1056
    %v1059 = vtanh.pop %v1058
    %v1060 = vsub.f32 1.0, %v1046
    %1062 = vrot.lane.b32.xlu0 %v1059, 96
    %v1063 = vpop.permute.xlu0 %1062
    %v1065 = vmul.f32 %v1060, %v1063
    %v1066 = vrot.slane %v1000, 1
    %1067 = vrot.lane.b32.xlu0 %v1066, 32
    %v1068 = vpop.permute.xlu0 %1067
    %v1070 = vmul.f32 %v1046, %v1068
    %v1071 = vadd.f32 %v1065, %v1070
    %1073 = vrot.lane.b32.xlu0 %v1071, 96
    %v1074 = vpop.permute.xlu0 %1073
    %vm1076 = vcmask 261127
    %1077 = vst.msk [vmem:[#allocation2 - $0x7] sm:$0x80] %vm1076, %v1074
    %1078 = vst.msk [vmem:[#allocation3] sm:$0x80] %vm1076, %v1074
    %v1079 = vrot.slane %v1022, 2
    %v1081 = vadd.f32 %v85, %v1079
    %v1082 = vxor.u32 %v1081, 2147483648
    %v1083 = vmul.f32 %v1082, 1.442695
    %v1084 = vpow.pop %v1083
    %v1085 = vadd.f32 %v1084, 1.0
    %v1086 = vrcp.pop %v1085
    %v1087 = vmul.f32 %v1085, %v1086
    %v1088 = vsub.f32 1.0, %v1087
    %v1089 = vmul.f32 %v1086, %v1088
    %v1090 = vadd.f32 %v1086, %v1089
    %vm1091 = vweird.f32 %v1085
    %vm1092 = vweird.f32 %v1086
    %vm1093 = vmor %vm1091, %vm1092
    %v1094 = vsel %vm1093, %v1086, %v1090
    %v1095 = vand.u32 2147483647, %v1085
    %vm1096 = vcmp.eq.f32.partialorder %v1095, 8.507059e+37
    %v1097 = vand.u32 %v1085, 2147483648
    %v1098 = vor.u32 1.1754944e-38, %v1097
    %v1099 = vsel %vm1096, %v1098, %v1094
    %v1100 = vmul.f32 1.0, %v1099
    %v1101 = vrot.slane %v1047, 2
    %1102 = vrot.lane.b32.xlu0 %v1101, 64
    %v1103 = vpop.permute.xlu0 %1102
    %v1105 = vmul.f32 %v1100, %v1103
    %1107 = vrot.lane.b32.xlu0 %v1105, 64
    %v1108 = vpop.permute.xlu0 %1107
    %v1110 = vadd.f32 %v85, %v1108
    %v1111 = vtanh.pop %v1110
    %v1112 = vsub.f32 1.0, %v1100
    %1114 = vrot.lane.b32.xlu0 %v1111, 96
    %v1115 = vpop.permute.xlu0 %1114
    %v1117 = vmul.f32 %v1112, %v1115
    %v1118 = vrot.slane %v1000, 2
    %1119 = vrot.lane.b32.xlu0 %v1118, 32
    %v1120 = vpop.permute.xlu0 %1119
    %v1122 = vmul.f32 %v1100, %v1120
    %v1123 = vadd.f32 %v1117, %v1122
    %1125 = vrot.lane.b32.xlu0 %v1123, 96
    %v1126 = vpop.permute.xlu0 %1125
    %1128 = vst.msk [vmem:[#allocation2 - $0x6] sm:$0x80] %vm1076, %v1126
    %1129 = vst.msk [vmem:[#allocation3 + $0x8] sm:$0x80] %vm1076, %v1126
    %v1130 = vld [vmem:[#allocation2] sm:$0x3]
    %vm1131 = vcmask 254976
    %1132 = vst.msk [vmem:[#allocation8] sm:$0x3] %vm1131, %v1130
    %v1133 = vld [vmem:[#allocation3] sm:$0xff]
    %v1134 = vld [vmem:[#allocation3 + $0x8] sm:$0xff]
    %v1135 = vld [vmem:[%s6] sm:$0xff]
    %v1136 = vld [vmem:[%s6 + $0x8] sm:$0xff]
    %v1137 = vld [vmem:[%s6 + $0x10] sm:$0xff]
    %v1138 = vld [vmem:[%s6 + $0x18] sm:$0xff]
    %v1139 = vld [vmem:[%s7] sm:$0x1]
    %v1141 = vperm.slane %v1139, 0
    %v1144 = vsel %vm93, %v1133, 0
    %v1147 = vsel %vm93, %v1134, 0
    %1149 = vmatpush.msra.mxu0 0.0
    %1150 = vmatpush.msra.mxu0 0.0
    %1151 = vmatpush.msra.mxu0 0.0
    %1152 = vmatpush.msra.mxu0 0.0
    %1153 = vmatpush.msra.mxu0 0.0
    %1154 = vmatpush.msra.mxu0 0.0
    %1155 = vmatpush.msra.mxu0 0.0
    %1156 = vmatpush.msra.mxu0 0.0
    %1157 = vmatpush.msra.mxu0 0.0
    %1158 = vmatpush.msra.mxu0 0.0
    %1159 = vmatpush.msra.mxu0 0.0
    %1160 = vmatpush.msra.mxu0 0.0
    %1161 = vmatpush.msra.mxu0 %v1138
    %1162 = vmatpush.msra.mxu0 %v1137
    %1163 = vmatpush.msra.mxu0 %v1136
    %1164 = vmatpush.msra.mxu0 %v1135
    %1165 = vmatmul.f32.gmra.mxu0 %v1144
    %v1166 = vpop.f32.mrf.mxu0
    %v1167 = vadd.f32 %v1141, %v1166
    %1168 = vmatmul.f32.gmra.mxu0 %v1147
    %v1169 = vpop.f32.mrf.mxu0
    %v1170 = vadd.f32 %v1141, %v1169
    %1171 = vdwg.mxu0
    %v1172 = vsel %vm57, %v1167, -inf
    %1173 = vmax.xlane.f32.xlu0 %v1172
    %v1174 = vpop.xlane.xlu0 %1173
    %v1175 = vsel %vm57, %v1170, -inf
    %1176 = vmax.xlane.f32.xlu0 %v1175
    %v1177 = vpop.xlane.xlu0 %1176
    %v1178 = vsub.f32 %v1167, %v1174
    %v1179 = vsub.f32 %v1170, %v1177
    %v1180 = vmul.f32 %v1178, 1.442695
    %v1181 = vpow.pop %v1180
    %v1182 = vmul.f32 %v1179, 1.442695
    %v1183 = vpow.pop %v1182
    %v1184 = vsel %vm57, %v1181, 0.0
    %1185 = vadd.xlane.f32.xlu0 %v1184
    %v1186 = vpop.xlane.xlu0 %1185
    %v1187 = vsel %vm57, %v1183, 0.0
    %1188 = vadd.xlane.f32.xlu0 %v1187
    %v1189 = vpop.xlane.xlu0 %1188
    %v1190 = vlog2.pop %v1186
    %v1191 = vmul.f32 %v1190, 0.6931472
    %v1192 = vlog2.pop %v1189
    %v1193 = vmul.f32 %v1192, 0.6931472
    %v1194 = vsub.f32 %v1178, %v1191
    %v1195 = vsub.f32 %v1179, %v1193
    %1196 = vst.msk [vmem:[#allocation7] sm:$0xff] %vm57, %v1194
    %1197 = vst.msk [vmem:[#allocation7 + $0x8] sm:$0xff] %vm57, %v1195
    // Predicated region
    $region38: #{tpu_custom_call.1} parent=1 // pred_check
      _
    $region39: #{tpu_custom_call.1} parent=1 // pred_check_branch
      %1199 = sbr.rel (0) target = $region41
    $region40: #{tpu_custom_call.1} parent=1 // pred_region
      %1201 = vsyncadd [#allocation6], 0
      %s1202 = sshll.u32 [#allocation7], 4
      %s1203 = int_to_ptr.vmem [resolvable:$true] %s1202
      %s1204 = sshll.u32 %s8, 4
      %s1205 = int_to_ptr.hbm [resolvable:$true] %s1204
      %1210 = dma.vmem_to_hbm [thread:$0]  %s1203, 256, %s1205, [#allocation6], 128, 128, 8
    $region41: #{tpu_custom_call.1} parent=1 // pred_fallthru
      _
    // Predicated region
    $region42: #{tpu_custom_call.1} parent=1 // pred_check
      _
    $region43: #{tpu_custom_call.1} parent=1 // pred_check_branch
      %1212 = sbr.rel (0) target = $region45
    $region44: #{tpu_custom_call.1} parent=1 // pred_region
      %1214 = vsyncadd [#allocation9], 0
      %s1216 = sshll.u32 [#allocation8], 4
      %s1217 = int_to_ptr.vmem [resolvable:$true] %s1216
      %s1218 = sshll.u32 %s9, 4
      %s1219 = int_to_ptr.hbm [resolvable:$true] %s1218
      %1221 = dma.vmem_to_hbm [thread:$0]  %s1217, 32, %s1219, [#allocation9]
    $region45: #{tpu_custom_call.1} parent=1 // pred_fallthru
      _
    // Predicated region
    $region46: #{tpu_custom_call.1} parent=1 // pred_check
      _
    $region47: #{tpu_custom_call.1} parent=1 // pred_check_branch
      %1223 = sbr.rel (0) target = $region49
    $region48: #{tpu_custom_call.1} parent=1 // pred_region
      %1225 = dma.done [#allocation6], 256
    $region49: #{tpu_custom_call.1} parent=1 // pred_fallthru
      _
    // Predicated region
    $region50: #{tpu_custom_call.1} parent=1 // pred_check
      _
    $region51: #{tpu_custom_call.1} parent=1 // pred_check_branch
      %1227 = sbr.rel (0) target = $region53
    $region52: #{tpu_custom_call.1} parent=1 // pred_region
      %1229 = dma.done [#allocation9], 32
    $region53: #{tpu_custom_call.1} parent=1 // pred_fallthru
      _
    %1230 = vsyncpa [#allocation5], 1
    %1231 = vsyncpa [#allocation6], 1
    %1232 = vsyncpa [#allocation9], 1

</llo_original>
